<compile_context>
chip_gen: v5e
topology: v5e:2x2
jax: 0.10.0
libtpu: 0.0.40
codegen_flags: <defaults>
</compile_context>

<pallas_src>
from functools import partial

import jax
import jax.numpy as jnp
from jax.experimental import pallas as pl
from jax.experimental.pallas import tpu as pltpu

IN_CHANNELS = 7       # matches the module
HIDDEN = 8            # hidden_channels (small synthetic size)
HEADS = 8             # GATConv heads
NUM_EXPERTS = 2
NEG_SLOPE = 0.2       # PyG GATConv leaky_relu default

G_PAD = 8             # padded graph count (sublane-dense head output)
NE_PAD = 128          # padded expert-logit width (lane-dense head output)


# ----------------------------- fused Pallas kernel ---------------------------

def _fused_expert_gate_kernel(
    x_ref,
    w1_ref, b1_ref, as1_ref, ad1_ref, ke1_ref,
    w2_ref, b2_ref, as2_ref, ad2_ref, ke2_ref,
    w3_ref, b3_ref, as3_ref, ad3_ref, ke3_ref,
    mask1_ref, eattr1_ref, hasin1_ref, mask2_ref, eattr2_ref,
    pool_ref, fc1w_ref, fc1b_ref, fc2w_ref, fc2b_ref,
    o_ref,
):
    H, C = HEADS, HIDDEN

    def gat_layer(h2d, w, b, a_src, a_dst, k_edge, mask, eattr, has_in=None):
        # h2d: (N, F_in); w: (F_in, H*C); b: (1, H*C)
        # a_src/a_dst: (H, 1, C); k_edge: (H, 1, 1); mask/eattr: (N, N) (dst, src)
        xp2d = jnp.dot(h2d, w, preferred_element_type=jnp.float32)        # (N, H*C) single MXU matmul
        # per-head view (H, N, C): static lane slices stacked along a new major axis
        xp = jnp.stack([xp2d[:, h * C:(h + 1) * C] for h in range(H)], axis=0)
        # attention coefficients, batched over all heads at once
        a_d = jnp.sum(xp * a_dst, axis=-1, keepdims=True)                 # (H, N, 1)  VPU reduce
        a_s = jnp.einsum('hqc,hnc->hqn', a_src, xp,
                         preferred_element_type=jnp.float32)               # (H, 1, N)
        logits = a_d + a_s + k_edge * eattr[None]                          # (H, dst, src)
        logits = jnp.where(logits >= 0.0, logits, NEG_SLOPE * logits)      # leaky_relu(0.2)
        logits = jnp.where(mask[None] > 0.0, logits, jnp.float32(-1e30))   # single masking pass
        mx = jnp.max(logits, axis=-1, keepdims=True)
        ex = jnp.exp(logits - mx)
        den = jnp.sum(ex, axis=-1, keepdims=True)                          # >= 1 always
        attn = ex * pl.reciprocal(den, approx=True)                        # EUP, not VALU divide
        # attention-weighted aggregation, batched over heads
        agg = jnp.einsum('hds,hsc->hdc', attn, xp,
                         preferred_element_type=jnp.float32)               # (H, N, C)
        if has_in is not None:
            # rows with no incoming edge aggregate to exactly 0 (PyG semantics
            # when add_self_loops=False); cheap (1, N, 1) multiply.
            agg = agg * has_in
        out = jnp.concatenate([agg[h] for h in range(H)], axis=-1) + b     # (N, H*C)
        return jnp.maximum(out, 0.0)                                       # ReLU after conv

    x = x_ref[...]
    h = gat_layer(x, w1_ref[...], b1_ref[...], as1_ref[...], ad1_ref[...],
                  ke1_ref[...], mask1_ref[...], eattr1_ref[...], hasin1_ref[...])
    h = gat_layer(h, w2_ref[...], b2_ref[...], as2_ref[...], ad2_ref[...],
                  ke2_ref[...], mask2_ref[...], eattr2_ref[...])
    h = gat_layer(h, w3_ref[...], b3_ref[...], as3_ref[...], ad3_ref[...],
                  ke3_ref[...], mask2_ref[...], eattr2_ref[...])

    # head: global_mean_pool (as matmul) + fc1/ReLU + fc2, fused in the same kernel.
    emb = jnp.dot(pool_ref[...], h, preferred_element_type=jnp.float32)    # (G_PAD, H*C)
    hid = jnp.dot(emb, fc1w_ref[...], preferred_element_type=jnp.float32) + fc1b_ref[...]
    hid = jnp.maximum(hid, 0.0)                                            # (G_PAD, 4*HIDDEN)
    o_ref[...] = jnp.dot(hid, fc2w_ref[...],
                         preferred_element_type=jnp.float32) + fc2b_ref[...]  # (G_PAD, NE_PAD)


# ------------------------------- glue / wrapper -------------------------------

def init_gat_params(key, in_c, out_c, heads):
    k1, k2, k3, k4, k5, k6 = jax.random.split(key, 6)
    return dict(
        w=jax.random.normal(k1, (in_c, heads * out_c), jnp.float32) * 0.1,
        att_src=jax.random.normal(k2, (heads, out_c), jnp.float32) * 0.1,
        att_dst=jax.random.normal(k3, (heads, out_c), jnp.float32) * 0.1,
        att_edge=jax.random.normal(k4, (heads, out_c), jnp.float32) * 0.1,
        w_edge=jax.random.normal(k5, (1, heads * out_c), jnp.float32) * 0.1,
        b=jax.random.normal(k6, (1, heads * out_c), jnp.float32) * 0.01,
    )


def _prep_conv(p):
    """Raw GATConv params -> kernel layout (head-batched attention vectors)."""
    heads, out_c = p["att_src"].shape
    a_src = p["att_src"][:, None, :]                                     # (H, 1, C)
    a_dst = p["att_dst"][:, None, :]                                     # (H, 1, C)
    # edge_dim == 1 => alpha_edge(e) = e * sum_c w_edge[h,c] * att_edge[h,c]
    k_edge = jnp.sum(p["w_edge"].reshape(heads, out_c) * p["att_edge"],
                     axis=-1).reshape(heads, 1, 1)                        # (H, 1, 1)
    return p["w"], p["b"], a_src, a_dst, k_edge


def dense_graph(src, dst, edge_attr, n):
    mask = jnp.zeros((n, n), jnp.float32).at[dst, src].set(1.0)
    eattr = jnp.zeros((n, n), jnp.float32).at[dst, src].set(edge_attr[:, 0])
    return mask, eattr


def add_mean_self_loops(mask, eattr):
    # GATConv(add_self_loops=True, fill_value='mean'): drop existing self loops,
    # add (i,i) with attr = mean of attrs of edges incoming to i (0 if none).
    n = mask.shape[0]
    diag = jnp.eye(n, dtype=jnp.float32)
    m = mask * (1.0 - diag)
    e = eattr * (1.0 - diag)
    deg = jnp.sum(m, axis=1, keepdims=True)
    mean_in = jnp.sum(e, axis=1, keepdims=True) / jnp.maximum(deg, 1.0)
    return m + diag, e + diag * mean_in


@partial(jax.jit, static_argnames=("num_graphs",))
def expert_gate_net(x, src, dst, edge_attr, batch, params, num_graphs):
    assert num_graphs <= G_PAD
    n = x.shape[0]

    mask1, eattr1 = dense_graph(src, dst, edge_attr, n)    # conv1: add_self_loops=False
    mask2, eattr2 = add_mean_self_loops(mask1, eattr1)     # conv2/3: self loops, fill='mean'
    has_in1 = (jnp.sum(mask1, axis=1, keepdims=True) > 0).astype(jnp.float32)[None]  # (1,N,1)

    c1 = _prep_conv(params["conv1"])
    c2 = _prep_conv(params["conv2"])
    c3 = _prep_conv(params["conv3"])

    # global_mean_pool matrix, padded to G_PAD rows (sublane-dense head output).
    onehot = (batch[None, :] == jnp.arange(num_graphs)[:, None]).astype(jnp.float32)
    pool = onehot / jnp.maximum(jnp.sum(onehot, axis=1, keepdims=True), 1.0)
    pool_pad = jnp.zeros((G_PAD, n), jnp.float32).at[:num_graphs].set(pool)

    # fc2 padded to 128 output lanes so the final store is a full (8,128) tile.
    k = params["fc2_w"].shape[0]
    fc2w_pad = jnp.zeros((k, NE_PAD), jnp.float32).at[:, :NUM_EXPERTS].set(params["fc2_w"])
    fc2b_pad = jnp.zeros((1, NE_PAD), jnp.float32).at[:, :NUM_EXPERTS].set(params["fc2_b"])

    vmem = pl.BlockSpec(memory_space=pltpu.MemorySpace.VMEM)
    out = pl.pallas_call(
        _fused_expert_gate_kernel,
        out_shape=jax.ShapeDtypeStruct((G_PAD, NE_PAD), jnp.float32),
        in_specs=[vmem] * 26,
        out_specs=vmem,
    )(x, *c1, *c2, *c3,
      mask1, eattr1, has_in1, mask2, eattr2,
      pool_pad, params["fc1_w"], params["fc1_b"], fc2w_pad, fc2b_pad)

    return out[:num_graphs, :NUM_EXPERTS]


# -------------------------------- main ---------------------------------------

if __name__ == "__main__":
    key = jax.random.PRNGKey(0)
    kx, ke, kc1, kc2, kc3, kf1, kf2 = jax.random.split(key, 7)

    N = 8  # two graphs of 4 nodes each
    x = jax.random.normal(kx, (N, IN_CHANNELS), jnp.float32)

    edges = [(0, 1), (1, 2), (2, 3), (3, 0), (1, 0), (2, 1),
             (4, 5), (5, 6), (6, 7), (7, 4), (5, 4), (6, 5)]
    src = jnp.array([e[0] for e in edges], jnp.int32)
    dst = jnp.array([e[1] for e in edges], jnp.int32)
    edge_attr = jax.random.normal(ke, (len(edges), 1), jnp.float32)
    batch = jnp.array([0, 0, 0, 0, 1, 1, 1, 1], jnp.int32)
    num_graphs = 2  # static Python int: no device->host sync, whole forward jits

    params = dict(
        conv1=init_gat_params(kc1, IN_CHANNELS, HIDDEN, HEADS),
        conv2=init_gat_params(kc2, HIDDEN * HEADS, HIDDEN, HEADS),
        conv3=init_gat_params(kc3, HIDDEN * HEADS, HIDDEN, HEADS),
        fc1_w=jax.random.normal(kf1, (HIDDEN * HEADS, HIDDEN * 4), jnp.float32) * 0.1,
        fc1_b=jnp.zeros((1, HIDDEN * 4), jnp.float32),
        fc2_w=jax.random.normal(kf2, (HIDDEN * 4, NUM_EXPERTS), jnp.float32) * 0.1,
        fc2_b=jnp.zeros((1, NUM_EXPERTS), jnp.float32),
    )

    logits = expert_gate_net(x, src, dst, edge_attr, batch, params, num_graphs=num_graphs)
    logits = jax.block_until_ready(logits)
    assert logits.shape == (num_graphs, NUM_EXPERTS) and logits.dtype == jnp.float32
    print("KERNEL_OK")
</pallas_src>

<mosaic_0001>
module attributes {stable_mosaic.version = 11 : i64} {
  func.func @_fused_expert_gate_kernel(%arg0: memref<8x7xf32, #tpu.memory_space<vmem>>, %arg1: memref<7x64xf32, #tpu.memory_space<vmem>>, %arg2: memref<1x64xf32, #tpu.memory_space<vmem>>, %arg3: memref<8x1x8xf32, #tpu.memory_space<vmem>>, %arg4: memref<8x1x8xf32, #tpu.memory_space<vmem>>, %arg5: memref<8x1x1xf32, #tpu.memory_space<vmem>>, %arg6: memref<64x64xf32, #tpu.memory_space<vmem>>, %arg7: memref<1x64xf32, #tpu.memory_space<vmem>>, %arg8: memref<8x1x8xf32, #tpu.memory_space<vmem>>, %arg9: memref<8x1x8xf32, #tpu.memory_space<vmem>>, %arg10: memref<8x1x1xf32, #tpu.memory_space<vmem>>, %arg11: memref<64x64xf32, #tpu.memory_space<vmem>>, %arg12: memref<1x64xf32, #tpu.memory_space<vmem>>, %arg13: memref<8x1x8xf32, #tpu.memory_space<vmem>>, %arg14: memref<8x1x8xf32, #tpu.memory_space<vmem>>, %arg15: memref<8x1x1xf32, #tpu.memory_space<vmem>>, %arg16: memref<8x8xf32, #tpu.memory_space<vmem>>, %arg17: memref<8x8xf32, #tpu.memory_space<vmem>>, %arg18: memref<1x8x1xf32, #tpu.memory_space<vmem>>, %arg19: memref<8x8xf32, #tpu.memory_space<vmem>>, %arg20: memref<8x8xf32, #tpu.memory_space<vmem>>, %arg21: memref<8x8xf32, #tpu.memory_space<vmem>>, %arg22: memref<64x32xf32, #tpu.memory_space<vmem>>, %arg23: memref<1x32xf32, #tpu.memory_space<vmem>>, %arg24: memref<32x128xf32, #tpu.memory_space<vmem>>, %arg25: memref<1x128xf32, #tpu.memory_space<vmem>>, %arg26: memref<8x128xf32, #tpu.memory_space<vmem>>) attributes {dimension_semantics = [], scalar_prefetch = 0 : i64, scratch_operands = 0 : i64, tpu.core_type = #tpu.core_type<tc>} {
    %c0 = arith.constant 0 : index
    %c0_0 = arith.constant 0 : index
    %0 = vector.load %arg0[%c0, %c0_0] : memref<8x7xf32, #tpu.memory_space<vmem>>, vector<8x7xf32>
    %c0_1 = arith.constant 0 : index
    %c0_2 = arith.constant 0 : index
    %1 = vector.load %arg1[%c0_1, %c0_2] : memref<7x64xf32, #tpu.memory_space<vmem>>, vector<7x64xf32>
    %c0_3 = arith.constant 0 : index
    %c0_4 = arith.constant 0 : index
    %2 = vector.load %arg2[%c0_3, %c0_4] : memref<1x64xf32, #tpu.memory_space<vmem>>, vector<1x64xf32>
    %c0_5 = arith.constant 0 : index
    %c0_6 = arith.constant 0 : index
    %c0_7 = arith.constant 0 : index
    %3 = vector.load %arg3[%c0_5, %c0_6, %c0_7] : memref<8x1x8xf32, #tpu.memory_space<vmem>>, vector<8x1x8xf32>
    %c0_8 = arith.constant 0 : index
    %c0_9 = arith.constant 0 : index
    %c0_10 = arith.constant 0 : index
    %4 = vector.load %arg4[%c0_8, %c0_9, %c0_10] : memref<8x1x8xf32, #tpu.memory_space<vmem>>, vector<8x1x8xf32>
    %c0_11 = arith.constant 0 : index
    %c0_12 = arith.constant 0 : index
    %c0_13 = arith.constant 0 : index
    %5 = vector.load %arg5[%c0_11, %c0_12, %c0_13] : memref<8x1x1xf32, #tpu.memory_space<vmem>>, vector<8x1x1xf32>
    %c0_14 = arith.constant 0 : index
    %c0_15 = arith.constant 0 : index
    %6 = vector.load %arg16[%c0_14, %c0_15] : memref<8x8xf32, #tpu.memory_space<vmem>>, vector<8x8xf32>
    %c0_16 = arith.constant 0 : index
    %c0_17 = arith.constant 0 : index
    %7 = vector.load %arg17[%c0_16, %c0_17] : memref<8x8xf32, #tpu.memory_space<vmem>>, vector<8x8xf32>
    %c0_18 = arith.constant 0 : index
    %c0_19 = arith.constant 0 : index
    %c0_20 = arith.constant 0 : index
    %8 = vector.load %arg18[%c0_18, %c0_19, %c0_20] : memref<1x8x1xf32, #tpu.memory_space<vmem>>, vector<1x8x1xf32>
    %cst = arith.constant dense<0.000000e+00> : vector<8x64xf32>
    %9 = tpu.matmul %0, %1, %cst {dimension_numbers = #tpu.dot_dimension_numbers<[1], [0], [0], [1], [0, 0, 1, 1], [], []>} : vector<8x7xf32>, vector<7x64xf32>, vector<8x64xf32> -> vector<8x64xf32>
    %10 = vector.extract_strided_slice %9 {offsets = [0, 0], sizes = [8, 8], strides = [1, 1]} : vector<8x64xf32> to vector<8x8xf32>
    %11 = vector.extract_strided_slice %9 {offsets = [0, 8], sizes = [8, 8], strides = [1, 1]} : vector<8x64xf32> to vector<8x8xf32>
    %12 = vector.extract_strided_slice %9 {offsets = [0, 16], sizes = [8, 8], strides = [1, 1]} : vector<8x64xf32> to vector<8x8xf32>
    %13 = vector.extract_strided_slice %9 {offsets = [0, 24], sizes = [8, 8], strides = [1, 1]} : vector<8x64xf32> to vector<8x8xf32>
    %14 = vector.extract_strided_slice %9 {offsets = [0, 32], sizes = [8, 8], strides = [1, 1]} : vector<8x64xf32> to vector<8x8xf32>
    %15 = vector.extract_strided_slice %9 {offsets = [0, 40], sizes = [8, 8], strides = [1, 1]} : vector<8x64xf32> to vector<8x8xf32>
    %16 = vector.extract_strided_slice %9 {offsets = [0, 48], sizes = [8, 8], strides = [1, 1]} : vector<8x64xf32> to vector<8x8xf32>
    %17 = vector.extract_strided_slice %9 {offsets = [0, 56], sizes = [8, 8], strides = [1, 1]} : vector<8x64xf32> to vector<8x8xf32>
    %18 = vector.shape_cast %10 : vector<8x8xf32> to vector<1x8x8xf32>
    %19 = vector.shape_cast %11 : vector<8x8xf32> to vector<1x8x8xf32>
    %20 = vector.shape_cast %12 : vector<8x8xf32> to vector<1x8x8xf32>
    %21 = vector.shape_cast %13 : vector<8x8xf32> to vector<1x8x8xf32>
    %22 = vector.shape_cast %14 : vector<8x8xf32> to vector<1x8x8xf32>
    %23 = vector.shape_cast %15 : vector<8x8xf32> to vector<1x8x8xf32>
    %24 = vector.shape_cast %16 : vector<8x8xf32> to vector<1x8x8xf32>
    %25 = vector.shape_cast %17 : vector<8x8xf32> to vector<1x8x8xf32>
    %26 = tpu.concatenate %18, %19, %20, %21, %22, %23, %24, %25 in 0 : vector<1x8x8xf32>, vector<1x8x8xf32>, vector<1x8x8xf32>, vector<1x8x8xf32>, vector<1x8x8xf32>, vector<1x8x8xf32>, vector<1x8x8xf32>, vector<1x8x8xf32> -> vector<8x8x8xf32>
    %27 = vector.broadcast %4 : vector<8x1x8xf32> to vector<8x8x8xf32>
    %28 = arith.mulf %26, %27 : vector<8x8x8xf32>
    %cst_21 = arith.constant dense<0.000000e+00> : vector<8x8xf32>
    %29 = vector.multi_reduction <add>, %28, %cst_21 [2] : vector<8x8x8xf32> to vector<8x8xf32>
    %30 = vector.shape_cast %29 : vector<8x8xf32> to vector<8x8x1xf32>
    "tpu.trace_start"() <{level = 10 : i32, message = "hqc,hnc->hqn"}> : () -> ()
    %cst_22 = arith.constant dense<0.000000e+00> : vector<8x1x8xf32>
    %31 = tpu.matmul %3, %26, %cst_22 {dimension_numbers = #tpu.dot_dimension_numbers<[2], [2], [1], [1], [0, 0, 0, 1, 1, 1], [0], [0]>} : vector<8x1x8xf32>, vector<8x8x8xf32>, vector<8x1x8xf32> -> vector<8x1x8xf32>
    "tpu.trace_stop"() : () -> ()
    %32 = vector.broadcast %30 : vector<8x8x1xf32> to vector<8x8x8xf32>
    %33 = vector.broadcast %31 : vector<8x1x8xf32> to vector<8x8x8xf32>
    %34 = arith.addf %32, %33 : vector<8x8x8xf32>
    %35 = vector.shape_cast %7 : vector<8x8xf32> to vector<1x8x8xf32>
    %36 = vector.broadcast %5 : vector<8x1x1xf32> to vector<8x8x8xf32>
    %37 = vector.broadcast %35 : vector<1x8x8xf32> to vector<8x8x8xf32>
    %38 = arith.mulf %36, %37 : vector<8x8x8xf32>
    %39 = arith.addf %34, %38 : vector<8x8x8xf32>
    %cst_23 = arith.constant 0.000000e+00 : f32
    %40 = vector.broadcast %cst_23 : f32 to vector<8x8x8xf32>
    %41 = arith.cmpf oge, %39, %40 : vector<8x8x8xf32>
    %cst_24 = arith.constant 2.000000e-01 : f32
    %42 = vector.broadcast %cst_24 : f32 to vector<8x8x8xf32>
    %43 = arith.mulf %42, %39 : vector<8x8x8xf32>
    %44 = arith.select %41, %39, %43 : vector<8x8x8xi1>, vector<8x8x8xf32>
    %45 = vector.shape_cast %6 : vector<8x8xf32> to vector<1x8x8xf32>
    %cst_25 = arith.constant 0.000000e+00 : f32
    %46 = vector.broadcast %cst_25 : f32 to vector<1x8x8xf32>
    %47 = arith.cmpf ogt, %45, %46 : vector<1x8x8xf32>
    %cst_26 = arith.constant -1.000000e+30 : f32
    %48 = vector.shape_cast %47 : vector<1x8x8xi1> to vector<1x8x8xi1>
    %49 = vector.broadcast %48 : vector<1x8x8xi1> to vector<8x8x8xi1>
    %50 = vector.broadcast %cst_26 : f32 to vector<8x8x8xf32>
    %51 = arith.select %49, %44, %50 : vector<8x8x8xi1>, vector<8x8x8xf32>
    %cst_27 = arith.constant dense<0xFF800000> : vector<8x8xf32>
    %52 = vector.multi_reduction <maximumf>, %51, %cst_27 [2] : vector<8x8x8xf32> to vector<8x8xf32>
    %53 = vector.shape_cast %52 : vector<8x8xf32> to vector<8x8x1xf32>
    %54 = vector.broadcast %53 : vector<8x8x1xf32> to vector<8x8x8xf32>
    %55 = arith.subf %51, %54 : vector<8x8x8xf32>
    %56 = math.exp %55 : vector<8x8x8xf32>
    %cst_28 = arith.constant dense<0.000000e+00> : vector<8x8xf32>
    %57 = vector.multi_reduction <add>, %56, %cst_28 [2] : vector<8x8x8xf32> to vector<8x8xf32>
    %58 = vector.shape_cast %57 : vector<8x8xf32> to vector<8x8x1xf32>
    %59 = tpu.reciprocal %58 {approx = true} : vector<8x8x1xf32> -> vector<8x8x1xf32>
    %60 = vector.broadcast %59 : vector<8x8x1xf32> to vector<8x8x8xf32>
    %61 = arith.mulf %56, %60 : vector<8x8x8xf32>
    "tpu.trace_start"() <{level = 10 : i32, message = "hds,hsc->hdc"}> : () -> ()
    %cst_29 = arith.constant dense<0.000000e+00> : vector<8x8x8xf32>
    %62 = tpu.matmul %61, %26, %cst_29 {dimension_numbers = #tpu.dot_dimension_numbers<[2], [1], [1], [2], [0, 0, 0, 1, 1, 2], [0], [0]>} : vector<8x8x8xf32>, vector<8x8x8xf32>, vector<8x8x8xf32> -> vector<8x8x8xf32>
    "tpu.trace_stop"() : () -> ()
    %63 = vector.broadcast %8 : vector<1x8x1xf32> to vector<8x8x8xf32>
    %64 = arith.mulf %62, %63 : vector<8x8x8xf32>
    %65 = vector.extract_strided_slice %64 {offsets = [0, 0, 0], sizes = [1, 8, 8], strides = [1, 1, 1]} : vector<8x8x8xf32> to vector<1x8x8xf32>
    %66 = vector.shape_cast %65 : vector<1x8x8xf32> to vector<8x8xf32>
    %67 = vector.extract_strided_slice %64 {offsets = [1, 0, 0], sizes = [1, 8, 8], strides = [1, 1, 1]} : vector<8x8x8xf32> to vector<1x8x8xf32>
    %68 = vector.shape_cast %67 : vector<1x8x8xf32> to vector<8x8xf32>
    %69 = vector.extract_strided_slice %64 {offsets = [2, 0, 0], sizes = [1, 8, 8], strides = [1, 1, 1]} : vector<8x8x8xf32> to vector<1x8x8xf32>
    %70 = vector.shape_cast %69 : vector<1x8x8xf32> to vector<8x8xf32>
    %71 = vector.extract_strided_slice %64 {offsets = [3, 0, 0], sizes = [1, 8, 8], strides = [1, 1, 1]} : vector<8x8x8xf32> to vector<1x8x8xf32>
    %72 = vector.shape_cast %71 : vector<1x8x8xf32> to vector<8x8xf32>
    %73 = vector.extract_strided_slice %64 {offsets = [4, 0, 0], sizes = [1, 8, 8], strides = [1, 1, 1]} : vector<8x8x8xf32> to vector<1x8x8xf32>
    %74 = vector.shape_cast %73 : vector<1x8x8xf32> to vector<8x8xf32>
    %75 = vector.extract_strided_slice %64 {offsets = [5, 0, 0], sizes = [1, 8, 8], strides = [1, 1, 1]} : vector<8x8x8xf32> to vector<1x8x8xf32>
    %76 = vector.shape_cast %75 : vector<1x8x8xf32> to vector<8x8xf32>
    %77 = vector.extract_strided_slice %64 {offsets = [6, 0, 0], sizes = [1, 8, 8], strides = [1, 1, 1]} : vector<8x8x8xf32> to vector<1x8x8xf32>
    %78 = vector.shape_cast %77 : vector<1x8x8xf32> to vector<8x8xf32>
    %79 = vector.extract_strided_slice %64 {offsets = [7, 0, 0], sizes = [1, 8, 8], strides = [1, 1, 1]} : vector<8x8x8xf32> to vector<1x8x8xf32>
    %80 = vector.shape_cast %79 : vector<1x8x8xf32> to vector<8x8xf32>
    %81 = tpu.concatenate %66, %68, %70, %72, %74, %76, %78, %80 in 1 : vector<8x8xf32>, vector<8x8xf32>, vector<8x8xf32>, vector<8x8xf32>, vector<8x8xf32>, vector<8x8xf32>, vector<8x8xf32>, vector<8x8xf32> -> vector<8x64xf32>
    %82 = vector.broadcast %2 : vector<1x64xf32> to vector<8x64xf32>
    %83 = arith.addf %81, %82 : vector<8x64xf32>
    %cst_30 = arith.constant 0.000000e+00 : f32
    %84 = vector.broadcast %cst_30 : f32 to vector<8x64xf32>
    %85 = arith.maximumf %83, %84 : vector<8x64xf32>
    %c0_31 = arith.constant 0 : index
    %c0_32 = arith.constant 0 : index
    %86 = vector.load %arg6[%c0_31, %c0_32] : memref<64x64xf32, #tpu.memory_space<vmem>>, vector<64x64xf32>
    %c0_33 = arith.constant 0 : index
    %c0_34 = arith.constant 0 : index
    %87 = vector.load %arg7[%c0_33, %c0_34] : memref<1x64xf32, #tpu.memory_space<vmem>>, vector<1x64xf32>
    %c0_35 = arith.constant 0 : index
    %c0_36 = arith.constant 0 : index
    %c0_37 = arith.constant 0 : index
    %88 = vector.load %arg8[%c0_35, %c0_36, %c0_37] : memref<8x1x8xf32, #tpu.memory_space<vmem>>, vector<8x1x8xf32>
    %c0_38 = arith.constant 0 : index
    %c0_39 = arith.constant 0 : index
    %c0_40 = arith.constant 0 : index
    %89 = vector.load %arg9[%c0_38, %c0_39, %c0_40] : memref<8x1x8xf32, #tpu.memory_space<vmem>>, vector<8x1x8xf32>
    %c0_41 = arith.constant 0 : index
    %c0_42 = arith.constant 0 : index
    %c0_43 = arith.constant 0 : index
    %90 = vector.load %arg10[%c0_41, %c0_42, %c0_43] : memref<8x1x1xf32, #tpu.memory_space<vmem>>, vector<8x1x1xf32>
    %c0_44 = arith.constant 0 : index
    %c0_45 = arith.constant 0 : index
    %91 = vector.load %arg19[%c0_44, %c0_45] : memref<8x8xf32, #tpu.memory_space<vmem>>, vector<8x8xf32>
    %c0_46 = arith.constant 0 : index
    %c0_47 = arith.constant 0 : index
    %92 = vector.load %arg20[%c0_46, %c0_47] : memref<8x8xf32, #tpu.memory_space<vmem>>, vector<8x8xf32>
    %cst_48 = arith.constant dense<0.000000e+00> : vector<8x64xf32>
    %93 = tpu.matmul %85, %86, %cst_48 {dimension_numbers = #tpu.dot_dimension_numbers<[1], [0], [0], [1], [0, 0, 1, 1], [], []>} : vector<8x64xf32>, vector<64x64xf32>, vector<8x64xf32> -> vector<8x64xf32>
    %94 = vector.extract_strided_slice %93 {offsets = [0, 0], sizes = [8, 8], strides = [1, 1]} : vector<8x64xf32> to vector<8x8xf32>
    %95 = vector.extract_strided_slice %93 {offsets = [0, 8], sizes = [8, 8], strides = [1, 1]} : vector<8x64xf32> to vector<8x8xf32>
    %96 = vector.extract_strided_slice %93 {offsets = [0, 16], sizes = [8, 8], strides = [1, 1]} : vector<8x64xf32> to vector<8x8xf32>
    %97 = vector.extract_strided_slice %93 {offsets = [0, 24], sizes = [8, 8], strides = [1, 1]} : vector<8x64xf32> to vector<8x8xf32>
    %98 = vector.extract_strided_slice %93 {offsets = [0, 32], sizes = [8, 8], strides = [1, 1]} : vector<8x64xf32> to vector<8x8xf32>
    %99 = vector.extract_strided_slice %93 {offsets = [0, 40], sizes = [8, 8], strides = [1, 1]} : vector<8x64xf32> to vector<8x8xf32>
    %100 = vector.extract_strided_slice %93 {offsets = [0, 48], sizes = [8, 8], strides = [1, 1]} : vector<8x64xf32> to vector<8x8xf32>
    %101 = vector.extract_strided_slice %93 {offsets = [0, 56], sizes = [8, 8], strides = [1, 1]} : vector<8x64xf32> to vector<8x8xf32>
    %102 = vector.shape_cast %94 : vector<8x8xf32> to vector<1x8x8xf32>
    %103 = vector.shape_cast %95 : vector<8x8xf32> to vector<1x8x8xf32>
    %104 = vector.shape_cast %96 : vector<8x8xf32> to vector<1x8x8xf32>
    %105 = vector.shape_cast %97 : vector<8x8xf32> to vector<1x8x8xf32>
    %106 = vector.shape_cast %98 : vector<8x8xf32> to vector<1x8x8xf32>
    %107 = vector.shape_cast %99 : vector<8x8xf32> to vector<1x8x8xf32>
    %108 = vector.shape_cast %100 : vector<8x8xf32> to vector<1x8x8xf32>
    %109 = vector.shape_cast %101 : vector<8x8xf32> to vector<1x8x8xf32>
    %110 = tpu.concatenate %102, %103, %104, %105, %106, %107, %108, %109 in 0 : vector<1x8x8xf32>, vector<1x8x8xf32>, vector<1x8x8xf32>, vector<1x8x8xf32>, vector<1x8x8xf32>, vector<1x8x8xf32>, vector<1x8x8xf32>, vector<1x8x8xf32> -> vector<8x8x8xf32>
    %111 = vector.broadcast %89 : vector<8x1x8xf32> to vector<8x8x8xf32>
    %112 = arith.mulf %110, %111 : vector<8x8x8xf32>
    %cst_49 = arith.constant dense<0.000000e+00> : vector<8x8xf32>
    %113 = vector.multi_reduction <add>, %112, %cst_49 [2] : vector<8x8x8xf32> to vector<8x8xf32>
    %114 = vector.shape_cast %113 : vector<8x8xf32> to vector<8x8x1xf32>
    "tpu.trace_start"() <{level = 10 : i32, message = "hqc,hnc->hqn"}> : () -> ()
    %cst_50 = arith.constant dense<0.000000e+00> : vector<8x1x8xf32>
    %115 = tpu.matmul %88, %110, %cst_50 {dimension_numbers = #tpu.dot_dimension_numbers<[2], [2], [1], [1], [0, 0, 0, 1, 1, 1], [0], [0]>} : vector<8x1x8xf32>, vector<8x8x8xf32>, vector<8x1x8xf32> -> vector<8x1x8xf32>
    "tpu.trace_stop"() : () -> ()
    %116 = vector.broadcast %114 : vector<8x8x1xf32> to vector<8x8x8xf32>
    %117 = vector.broadcast %115 : vector<8x1x8xf32> to vector<8x8x8xf32>
    %118 = arith.addf %116, %117 : vector<8x8x8xf32>
    %119 = vector.shape_cast %92 : vector<8x8xf32> to vector<1x8x8xf32>
    %120 = vector.broadcast %90 : vector<8x1x1xf32> to vector<8x8x8xf32>
    %121 = vector.broadcast %119 : vector<1x8x8xf32> to vector<8x8x8xf32>
    %122 = arith.mulf %120, %121 : vector<8x8x8xf32>
    %123 = arith.addf %118, %122 : vector<8x8x8xf32>
    %cst_51 = arith.constant 0.000000e+00 : f32
    %124 = vector.broadcast %cst_51 : f32 to vector<8x8x8xf32>
    %125 = arith.cmpf oge, %123, %124 : vector<8x8x8xf32>
    %cst_52 = arith.constant 2.000000e-01 : f32
    %126 = vector.broadcast %cst_52 : f32 to vector<8x8x8xf32>
    %127 = arith.mulf %126, %123 : vector<8x8x8xf32>
    %128 = arith.select %125, %123, %127 : vector<8x8x8xi1>, vector<8x8x8xf32>
    %129 = vector.shape_cast %91 : vector<8x8xf32> to vector<1x8x8xf32>
    %cst_53 = arith.constant 0.000000e+00 : f32
    %130 = vector.broadcast %cst_53 : f32 to vector<1x8x8xf32>
    %131 = arith.cmpf ogt, %129, %130 : vector<1x8x8xf32>
    %cst_54 = arith.constant -1.000000e+30 : f32
    %132 = vector.shape_cast %131 : vector<1x8x8xi1> to vector<1x8x8xi1>
    %133 = vector.broadcast %132 : vector<1x8x8xi1> to vector<8x8x8xi1>
    %134 = vector.broadcast %cst_54 : f32 to vector<8x8x8xf32>
    %135 = arith.select %133, %128, %134 : vector<8x8x8xi1>, vector<8x8x8xf32>
    %cst_55 = arith.constant dense<0xFF800000> : vector<8x8xf32>
    %136 = vector.multi_reduction <maximumf>, %135, %cst_55 [2] : vector<8x8x8xf32> to vector<8x8xf32>
    %137 = vector.shape_cast %136 : vector<8x8xf32> to vector<8x8x1xf32>
    %138 = vector.broadcast %137 : vector<8x8x1xf32> to vector<8x8x8xf32>
    %139 = arith.subf %135, %138 : vector<8x8x8xf32>
    %140 = math.exp %139 : vector<8x8x8xf32>
    %cst_56 = arith.constant dense<0.000000e+00> : vector<8x8xf32>
    %141 = vector.multi_reduction <add>, %140, %cst_56 [2] : vector<8x8x8xf32> to vector<8x8xf32>
    %142 = vector.shape_cast %141 : vector<8x8xf32> to vector<8x8x1xf32>
    %143 = tpu.reciprocal %142 {approx = true} : vector<8x8x1xf32> -> vector<8x8x1xf32>
    %144 = vector.broadcast %143 : vector<8x8x1xf32> to vector<8x8x8xf32>
    %145 = arith.mulf %140, %144 : vector<8x8x8xf32>
    "tpu.trace_start"() <{level = 10 : i32, message = "hds,hsc->hdc"}> : () -> ()
    %cst_57 = arith.constant dense<0.000000e+00> : vector<8x8x8xf32>
    %146 = tpu.matmul %145, %110, %cst_57 {dimension_numbers = #tpu.dot_dimension_numbers<[2], [1], [1], [2], [0, 0, 0, 1, 1, 2], [0], [0]>} : vector<8x8x8xf32>, vector<8x8x8xf32>, vector<8x8x8xf32> -> vector<8x8x8xf32>
    "tpu.trace_stop"() : () -> ()
    %147 = vector.extract_strided_slice %146 {offsets = [0, 0, 0], sizes = [1, 8, 8], strides = [1, 1, 1]} : vector<8x8x8xf32> to vector<1x8x8xf32>
    %148 = vector.shape_cast %147 : vector<1x8x8xf32> to vector<8x8xf32>
    %149 = vector.extract_strided_slice %146 {offsets = [1, 0, 0], sizes = [1, 8, 8], strides = [1, 1, 1]} : vector<8x8x8xf32> to vector<1x8x8xf32>
    %150 = vector.shape_cast %149 : vector<1x8x8xf32> to vector<8x8xf32>
    %151 = vector.extract_strided_slice %146 {offsets = [2, 0, 0], sizes = [1, 8, 8], strides = [1, 1, 1]} : vector<8x8x8xf32> to vector<1x8x8xf32>
    %152 = vector.shape_cast %151 : vector<1x8x8xf32> to vector<8x8xf32>
    %153 = vector.extract_strided_slice %146 {offsets = [3, 0, 0], sizes = [1, 8, 8], strides = [1, 1, 1]} : vector<8x8x8xf32> to vector<1x8x8xf32>
    %154 = vector.shape_cast %153 : vector<1x8x8xf32> to vector<8x8xf32>
    %155 = vector.extract_strided_slice %146 {offsets = [4, 0, 0], sizes = [1, 8, 8], strides = [1, 1, 1]} : vector<8x8x8xf32> to vector<1x8x8xf32>
    %156 = vector.shape_cast %155 : vector<1x8x8xf32> to vector<8x8xf32>
    %157 = vector.extract_strided_slice %146 {offsets = [5, 0, 0], sizes = [1, 8, 8], strides = [1, 1, 1]} : vector<8x8x8xf32> to vector<1x8x8xf32>
    %158 = vector.shape_cast %157 : vector<1x8x8xf32> to vector<8x8xf32>
    %159 = vector.extract_strided_slice %146 {offsets = [6, 0, 0], sizes = [1, 8, 8], strides = [1, 1, 1]} : vector<8x8x8xf32> to vector<1x8x8xf32>
    %160 = vector.shape_cast %159 : vector<1x8x8xf32> to vector<8x8xf32>
    %161 = vector.extract_strided_slice %146 {offsets = [7, 0, 0], sizes = [1, 8, 8], strides = [1, 1, 1]} : vector<8x8x8xf32> to vector<1x8x8xf32>
    %162 = vector.shape_cast %161 : vector<1x8x8xf32> to vector<8x8xf32>
    %163 = tpu.concatenate %148, %150, %152, %154, %156, %158, %160, %162 in 1 : vector<8x8xf32>, vector<8x8xf32>, vector<8x8xf32>, vector<8x8xf32>, vector<8x8xf32>, vector<8x8xf32>, vector<8x8xf32>, vector<8x8xf32> -> vector<8x64xf32>
    %164 = vector.broadcast %87 : vector<1x64xf32> to vector<8x64xf32>
    %165 = arith.addf %163, %164 : vector<8x64xf32>
    %cst_58 = arith.constant 0.000000e+00 : f32
    %166 = vector.broadcast %cst_58 : f32 to vector<8x64xf32>
    %167 = arith.maximumf %165, %166 : vector<8x64xf32>
    %c0_59 = arith.constant 0 : index
    %c0_60 = arith.constant 0 : index
    %168 = vector.load %arg11[%c0_59, %c0_60] : memref<64x64xf32, #tpu.memory_space<vmem>>, vector<64x64xf32>
    %c0_61 = arith.constant 0 : index
    %c0_62 = arith.constant 0 : index
    %169 = vector.load %arg12[%c0_61, %c0_62] : memref<1x64xf32, #tpu.memory_space<vmem>>, vector<1x64xf32>
    %c0_63 = arith.constant 0 : index
    %c0_64 = arith.constant 0 : index
    %c0_65 = arith.constant 0 : index
    %170 = vector.load %arg13[%c0_63, %c0_64, %c0_65] : memref<8x1x8xf32, #tpu.memory_space<vmem>>, vector<8x1x8xf32>
    %c0_66 = arith.constant 0 : index
    %c0_67 = arith.constant 0 : index
    %c0_68 = arith.constant 0 : index
    %171 = vector.load %arg14[%c0_66, %c0_67, %c0_68] : memref<8x1x8xf32, #tpu.memory_space<vmem>>, vector<8x1x8xf32>
    %c0_69 = arith.constant 0 : index
    %c0_70 = arith.constant 0 : index
    %c0_71 = arith.constant 0 : index
    %172 = vector.load %arg15[%c0_69, %c0_70, %c0_71] : memref<8x1x1xf32, #tpu.memory_space<vmem>>, vector<8x1x1xf32>
    %c0_72 = arith.constant 0 : index
    %c0_73 = arith.constant 0 : index
    %173 = vector.load %arg19[%c0_72, %c0_73] : memref<8x8xf32, #tpu.memory_space<vmem>>, vector<8x8xf32>
    %c0_74 = arith.constant 0 : index
    %c0_75 = arith.constant 0 : index
    %174 = vector.load %arg20[%c0_74, %c0_75] : memref<8x8xf32, #tpu.memory_space<vmem>>, vector<8x8xf32>
    %cst_76 = arith.constant dense<0.000000e+00> : vector<8x64xf32>
    %175 = tpu.matmul %167, %168, %cst_76 {dimension_numbers = #tpu.dot_dimension_numbers<[1], [0], [0], [1], [0, 0, 1, 1], [], []>} : vector<8x64xf32>, vector<64x64xf32>, vector<8x64xf32> -> vector<8x64xf32>
    %176 = vector.extract_strided_slice %175 {offsets = [0, 0], sizes = [8, 8], strides = [1, 1]} : vector<8x64xf32> to vector<8x8xf32>
    %177 = vector.extract_strided_slice %175 {offsets = [0, 8], sizes = [8, 8], strides = [1, 1]} : vector<8x64xf32> to vector<8x8xf32>
    %178 = vector.extract_strided_slice %175 {offsets = [0, 16], sizes = [8, 8], strides = [1, 1]} : vector<8x64xf32> to vector<8x8xf32>
    %179 = vector.extract_strided_slice %175 {offsets = [0, 24], sizes = [8, 8], strides = [1, 1]} : vector<8x64xf32> to vector<8x8xf32>
    %180 = vector.extract_strided_slice %175 {offsets = [0, 32], sizes = [8, 8], strides = [1, 1]} : vector<8x64xf32> to vector<8x8xf32>
    %181 = vector.extract_strided_slice %175 {offsets = [0, 40], sizes = [8, 8], strides = [1, 1]} : vector<8x64xf32> to vector<8x8xf32>
    %182 = vector.extract_strided_slice %175 {offsets = [0, 48], sizes = [8, 8], strides = [1, 1]} : vector<8x64xf32> to vector<8x8xf32>
    %183 = vector.extract_strided_slice %175 {offsets = [0, 56], sizes = [8, 8], strides = [1, 1]} : vector<8x64xf32> to vector<8x8xf32>
    %184 = vector.shape_cast %176 : vector<8x8xf32> to vector<1x8x8xf32>
    %185 = vector.shape_cast %177 : vector<8x8xf32> to vector<1x8x8xf32>
    %186 = vector.shape_cast %178 : vector<8x8xf32> to vector<1x8x8xf32>
    %187 = vector.shape_cast %179 : vector<8x8xf32> to vector<1x8x8xf32>
    %188 = vector.shape_cast %180 : vector<8x8xf32> to vector<1x8x8xf32>
    %189 = vector.shape_cast %181 : vector<8x8xf32> to vector<1x8x8xf32>
    %190 = vector.shape_cast %182 : vector<8x8xf32> to vector<1x8x8xf32>
    %191 = vector.shape_cast %183 : vector<8x8xf32> to vector<1x8x8xf32>
    %192 = tpu.concatenate %184, %185, %186, %187, %188, %189, %190, %191 in 0 : vector<1x8x8xf32>, vector<1x8x8xf32>, vector<1x8x8xf32>, vector<1x8x8xf32>, vector<1x8x8xf32>, vector<1x8x8xf32>, vector<1x8x8xf32>, vector<1x8x8xf32> -> vector<8x8x8xf32>
    %193 = vector.broadcast %171 : vector<8x1x8xf32> to vector<8x8x8xf32>
    %194 = arith.mulf %192, %193 : vector<8x8x8xf32>
    %cst_77 = arith.constant dense<0.000000e+00> : vector<8x8xf32>
    %195 = vector.multi_reduction <add>, %194, %cst_77 [2] : vector<8x8x8xf32> to vector<8x8xf32>
    %196 = vector.shape_cast %195 : vector<8x8xf32> to vector<8x8x1xf32>
    "tpu.trace_start"() <{level = 10 : i32, message = "hqc,hnc->hqn"}> : () -> ()
    %cst_78 = arith.constant dense<0.000000e+00> : vector<8x1x8xf32>
    %197 = tpu.matmul %170, %192, %cst_78 {dimension_numbers = #tpu.dot_dimension_numbers<[2], [2], [1], [1], [0, 0, 0, 1, 1, 1], [0], [0]>} : vector<8x1x8xf32>, vector<8x8x8xf32>, vector<8x1x8xf32> -> vector<8x1x8xf32>
    "tpu.trace_stop"() : () -> ()
    %198 = vector.broadcast %196 : vector<8x8x1xf32> to vector<8x8x8xf32>
    %199 = vector.broadcast %197 : vector<8x1x8xf32> to vector<8x8x8xf32>
    %200 = arith.addf %198, %199 : vector<8x8x8xf32>
    %201 = vector.shape_cast %174 : vector<8x8xf32> to vector<1x8x8xf32>
    %202 = vector.broadcast %172 : vector<8x1x1xf32> to vector<8x8x8xf32>
    %203 = vector.broadcast %201 : vector<1x8x8xf32> to vector<8x8x8xf32>
    %204 = arith.mulf %202, %203 : vector<8x8x8xf32>
    %205 = arith.addf %200, %204 : vector<8x8x8xf32>
    %cst_79 = arith.constant 0.000000e+00 : f32
    %206 = vector.broadcast %cst_79 : f32 to vector<8x8x8xf32>
    %207 = arith.cmpf oge, %205, %206 : vector<8x8x8xf32>
    %cst_80 = arith.constant 2.000000e-01 : f32
    %208 = vector.broadcast %cst_80 : f32 to vector<8x8x8xf32>
    %209 = arith.mulf %208, %205 : vector<8x8x8xf32>
    %210 = arith.select %207, %205, %209 : vector<8x8x8xi1>, vector<8x8x8xf32>
    %211 = vector.shape_cast %173 : vector<8x8xf32> to vector<1x8x8xf32>
    %cst_81 = arith.constant 0.000000e+00 : f32
    %212 = vector.broadcast %cst_81 : f32 to vector<1x8x8xf32>
    %213 = arith.cmpf ogt, %211, %212 : vector<1x8x8xf32>
    %cst_82 = arith.constant -1.000000e+30 : f32
    %214 = vector.shape_cast %213 : vector<1x8x8xi1> to vector<1x8x8xi1>
    %215 = vector.broadcast %214 : vector<1x8x8xi1> to vector<8x8x8xi1>
    %216 = vector.broadcast %cst_82 : f32 to vector<8x8x8xf32>
    %217 = arith.select %215, %210, %216 : vector<8x8x8xi1>, vector<8x8x8xf32>
    %cst_83 = arith.constant dense<0xFF800000> : vector<8x8xf32>
    %218 = vector.multi_reduction <maximumf>, %217, %cst_83 [2] : vector<8x8x8xf32> to vector<8x8xf32>
    %219 = vector.shape_cast %218 : vector<8x8xf32> to vector<8x8x1xf32>
    %220 = vector.broadcast %219 : vector<8x8x1xf32> to vector<8x8x8xf32>
    %221 = arith.subf %217, %220 : vector<8x8x8xf32>
    %222 = math.exp %221 : vector<8x8x8xf32>
    %cst_84 = arith.constant dense<0.000000e+00> : vector<8x8xf32>
    %223 = vector.multi_reduction <add>, %222, %cst_84 [2] : vector<8x8x8xf32> to vector<8x8xf32>
    %224 = vector.shape_cast %223 : vector<8x8xf32> to vector<8x8x1xf32>
    %225 = tpu.reciprocal %224 {approx = true} : vector<8x8x1xf32> -> vector<8x8x1xf32>
    %226 = vector.broadcast %225 : vector<8x8x1xf32> to vector<8x8x8xf32>
    %227 = arith.mulf %222, %226 : vector<8x8x8xf32>
    "tpu.trace_start"() <{level = 10 : i32, message = "hds,hsc->hdc"}> : () -> ()
    %cst_85 = arith.constant dense<0.000000e+00> : vector<8x8x8xf32>
    %228 = tpu.matmul %227, %192, %cst_85 {dimension_numbers = #tpu.dot_dimension_numbers<[2], [1], [1], [2], [0, 0, 0, 1, 1, 2], [0], [0]>} : vector<8x8x8xf32>, vector<8x8x8xf32>, vector<8x8x8xf32> -> vector<8x8x8xf32>
    "tpu.trace_stop"() : () -> ()
    %229 = vector.extract_strided_slice %228 {offsets = [0, 0, 0], sizes = [1, 8, 8], strides = [1, 1, 1]} : vector<8x8x8xf32> to vector<1x8x8xf32>
    %230 = vector.shape_cast %229 : vector<1x8x8xf32> to vector<8x8xf32>
    %231 = vector.extract_strided_slice %228 {offsets = [1, 0, 0], sizes = [1, 8, 8], strides = [1, 1, 1]} : vector<8x8x8xf32> to vector<1x8x8xf32>
    %232 = vector.shape_cast %231 : vector<1x8x8xf32> to vector<8x8xf32>
    %233 = vector.extract_strided_slice %228 {offsets = [2, 0, 0], sizes = [1, 8, 8], strides = [1, 1, 1]} : vector<8x8x8xf32> to vector<1x8x8xf32>
    %234 = vector.shape_cast %233 : vector<1x8x8xf32> to vector<8x8xf32>
    %235 = vector.extract_strided_slice %228 {offsets = [3, 0, 0], sizes = [1, 8, 8], strides = [1, 1, 1]} : vector<8x8x8xf32> to vector<1x8x8xf32>
    %236 = vector.shape_cast %235 : vector<1x8x8xf32> to vector<8x8xf32>
    %237 = vector.extract_strided_slice %228 {offsets = [4, 0, 0], sizes = [1, 8, 8], strides = [1, 1, 1]} : vector<8x8x8xf32> to vector<1x8x8xf32>
    %238 = vector.shape_cast %237 : vector<1x8x8xf32> to vector<8x8xf32>
    %239 = vector.extract_strided_slice %228 {offsets = [5, 0, 0], sizes = [1, 8, 8], strides = [1, 1, 1]} : vector<8x8x8xf32> to vector<1x8x8xf32>
    %240 = vector.shape_cast %239 : vector<1x8x8xf32> to vector<8x8xf32>
    %241 = vector.extract_strided_slice %228 {offsets = [6, 0, 0], sizes = [1, 8, 8], strides = [1, 1, 1]} : vector<8x8x8xf32> to vector<1x8x8xf32>
    %242 = vector.shape_cast %241 : vector<1x8x8xf32> to vector<8x8xf32>
    %243 = vector.extract_strided_slice %228 {offsets = [7, 0, 0], sizes = [1, 8, 8], strides = [1, 1, 1]} : vector<8x8x8xf32> to vector<1x8x8xf32>
    %244 = vector.shape_cast %243 : vector<1x8x8xf32> to vector<8x8xf32>
    %245 = tpu.concatenate %230, %232, %234, %236, %238, %240, %242, %244 in 1 : vector<8x8xf32>, vector<8x8xf32>, vector<8x8xf32>, vector<8x8xf32>, vector<8x8xf32>, vector<8x8xf32>, vector<8x8xf32>, vector<8x8xf32> -> vector<8x64xf32>
    %246 = vector.broadcast %169 : vector<1x64xf32> to vector<8x64xf32>
    %247 = arith.addf %245, %246 : vector<8x64xf32>
    %cst_86 = arith.constant 0.000000e+00 : f32
    %248 = vector.broadcast %cst_86 : f32 to vector<8x64xf32>
    %249 = arith.maximumf %247, %248 : vector<8x64xf32>
    %c0_87 = arith.constant 0 : index
    %c0_88 = arith.constant 0 : index
    %250 = vector.load %arg21[%c0_87, %c0_88] : memref<8x8xf32, #tpu.memory_space<vmem>>, vector<8x8xf32>
    %cst_89 = arith.constant dense<0.000000e+00> : vector<8x64xf32>
    %251 = tpu.matmul %250, %249, %cst_89 {dimension_numbers = #tpu.dot_dimension_numbers<[1], [0], [0], [1], [0, 0, 1, 1], [], []>} : vector<8x8xf32>, vector<8x64xf32>, vector<8x64xf32> -> vector<8x64xf32>
    %c0_90 = arith.constant 0 : index
    %c0_91 = arith.constant 0 : index
    %252 = vector.load %arg22[%c0_90, %c0_91] : memref<64x32xf32, #tpu.memory_space<vmem>>, vector<64x32xf32>
    %cst_92 = arith.constant dense<0.000000e+00> : vector<8x32xf32>
    %253 = tpu.matmul %251, %252, %cst_92 {dimension_numbers = #tpu.dot_dimension_numbers<[1], [0], [0], [1], [0, 0, 1, 1], [], []>} : vector<8x64xf32>, vector<64x32xf32>, vector<8x32xf32> -> vector<8x32xf32>
    %c0_93 = arith.constant 0 : index
    %c0_94 = arith.constant 0 : index
    %254 = vector.load %arg23[%c0_93, %c0_94] : memref<1x32xf32, #tpu.memory_space<vmem>>, vector<1x32xf32>
    %255 = vector.broadcast %254 : vector<1x32xf32> to vector<8x32xf32>
    %256 = arith.addf %253, %255 : vector<8x32xf32>
    %cst_95 = arith.constant 0.000000e+00 : f32
    %257 = vector.broadcast %cst_95 : f32 to vector<8x32xf32>
    %258 = arith.maximumf %256, %257 : vector<8x32xf32>
    %c0_96 = arith.constant 0 : index
    %c0_97 = arith.constant 0 : index
    %259 = vector.load %arg24[%c0_96, %c0_97] : memref<32x128xf32, #tpu.memory_space<vmem>>, vector<32x128xf32>
    %cst_98 = arith.constant dense<0.000000e+00> : vector<8x128xf32>
    %260 = tpu.matmul %258, %259, %cst_98 {dimension_numbers = #tpu.dot_dimension_numbers<[1], [0], [0], [1], [0, 0, 1, 1], [], []>} : vector<8x32xf32>, vector<32x128xf32>, vector<8x128xf32> -> vector<8x128xf32>
    %c0_99 = arith.constant 0 : index
    %c0_100 = arith.constant 0 : index
    %261 = vector.load %arg25[%c0_99, %c0_100] : memref<1x128xf32, #tpu.memory_space<vmem>>, vector<1x128xf32>
    %262 = vector.broadcast %261 : vector<1x128xf32> to vector<8x128xf32>
    %263 = arith.addf %260, %262 : vector<8x128xf32>
    %c0_101 = arith.constant 0 : index
    %c0_102 = arith.constant 0 : index
    %264 = vector.load %arg26[%c0_101, %c0_102] : memref<8x128xf32, #tpu.memory_space<vmem>>, vector<8x128xf32>
    tpu.vector_store %arg26[%c0_101, %c0_102], %263 {strides = array<i32>} : memref<8x128xf32, #tpu.memory_space<vmem>>, vector<8x128xf32>,
    return
  }
}

</mosaic_0001>

<llo_original>
// kernel: expert_gate_net.1
$region0: #{expert_gate_net.1}
  #allocation0 [shape = 'u32[]', space=smem, size = 0x4, offset = 0x4, fixed_abs, tag = 'smem constant byte address 0x4 - core index']
  #allocation1 [shape = 'u32[72,128]{1,0:T(1,128)}', space=vmem, size = 0x9000, scoped, tag = 'internal scratch']
  %s0 = inlined_call_operand.vmem [shape: f32[8,7], index: 0, kind: input, shape index: {}]
  %s1 = inlined_call_operand.vmem [shape: f32[7,64], index: 1, kind: input, shape index: {}]
  %s2 = inlined_call_operand.vmem [shape: f32[1,64], index: 2, kind: input, shape index: {}]
  %s3 = inlined_call_operand.vmem [shape: f32[8,1,8], index: 3, kind: input, shape index: {}]
  %s4 = inlined_call_operand.vmem [shape: f32[8,1,8], index: 4, kind: input, shape index: {}]
  %s5 = inlined_call_operand.vmem [shape: f32[8,1,1], index: 5, kind: input, shape index: {}]
  %s6 = inlined_call_operand.vmem [shape: f32[64,64], index: 6, kind: input, shape index: {}]
  %s7 = inlined_call_operand.vmem [shape: f32[1,64], index: 7, kind: input, shape index: {}]
  %s8 = inlined_call_operand.vmem [shape: f32[8,1,8], index: 8, kind: input, shape index: {}]
  %s9 = inlined_call_operand.vmem [shape: f32[8,1,8], index: 9, kind: input, shape index: {}]
  %s10 = inlined_call_operand.vmem [shape: f32[8,1,1], index: 10, kind: input, shape index: {}]
  %s11 = inlined_call_operand.vmem [shape: f32[64,64], index: 11, kind: input, shape index: {}]
  %s12 = inlined_call_operand.vmem [shape: f32[1,64], index: 12, kind: input, shape index: {}]
  %s13 = inlined_call_operand.vmem [shape: f32[8,1,8], index: 13, kind: input, shape index: {}]
  %s14 = inlined_call_operand.vmem [shape: f32[8,1,8], index: 14, kind: input, shape index: {}]
  %s15 = inlined_call_operand.vmem [shape: f32[8,1,1], index: 15, kind: input, shape index: {}]
  %s16 = inlined_call_operand.vmem [shape: f32[8,8], index: 16, kind: input, shape index: {}]
  %s17 = inlined_call_operand.vmem [shape: f32[8,8], index: 17, kind: input, shape index: {}]
  %s18 = inlined_call_operand.vmem [shape: f32[1,8,1], index: 18, kind: input, shape index: {}]
  %s19 = inlined_call_operand.vmem [shape: f32[8,8], index: 19, kind: input, shape index: {}]
  %s20 = inlined_call_operand.vmem [shape: f32[8,8], index: 20, kind: input, shape index: {}]
  %s21 = inlined_call_operand.vmem [shape: f32[8,8], index: 21, kind: input, shape index: {}]
  %s22 = inlined_call_operand.vmem [shape: f32[64,32], index: 22, kind: input, shape index: {}]
  %s23 = inlined_call_operand.vmem [shape: f32[1,32], index: 23, kind: input, shape index: {}]
  %s24 = inlined_call_operand.vmem [shape: f32[32,128], index: 24, kind: input, shape index: {}]
  %s25 = inlined_call_operand.vmem [shape: f32[1,128], index: 25, kind: input, shape index: {}]
  %s26 = inlined_call_operand.vmem [shape: f32[8,128], index: 26, kind: output, shape index: {}]
  %s27 = sld [smem:[#allocation0]]
  $region114: #{expert_gate_net.1} parent=0
    _
  %s29 = ssub.s32 1, %s27
  %s30 = scalar_select 0, %s29, %s27
  // Predicated region
  $region2: #{expert_gate_net.1} parent=0 // pred_check
    _
  $region3: #{expert_gate_net.1} parent=0 // pred_check_branch
    %32 = sbr.rel (0) target = $region5
  $region4: #{expert_gate_net.1} parent=0 // pred_region
    _
  $region5: #{expert_gate_net.1} parent=0 // pred_fallthru
    _
  // Predicated region
  $region6: #{expert_gate_net.1} parent=0 // pred_check
    _
  $region7: #{expert_gate_net.1} parent=0 // pred_check_branch
    %34 = sbr.rel (0) target = $region9
  $region8: #{expert_gate_net.1} parent=0 // pred_region
    _
  $region9: #{expert_gate_net.1} parent=0 // pred_fallthru
    _
  // Predicated region
  $region10: #{expert_gate_net.1} parent=0 // pred_check
    _
  $region11: #{expert_gate_net.1} parent=0 // pred_check_branch
    %36 = sbr.rel (0) target = $region13
  $region12: #{expert_gate_net.1} parent=0 // pred_region
    _
  $region13: #{expert_gate_net.1} parent=0 // pred_fallthru
    _
  // Predicated region
  $region14: #{expert_gate_net.1} parent=0 // pred_check
    _
  $region15: #{expert_gate_net.1} parent=0 // pred_check_branch
    %38 = sbr.rel (0) target = $region17
  $region16: #{expert_gate_net.1} parent=0 // pred_region
    _
  $region17: #{expert_gate_net.1} parent=0 // pred_fallthru
    _
  // Predicated region
  $region18: #{expert_gate_net.1} parent=0 // pred_check
    _
  $region19: #{expert_gate_net.1} parent=0 // pred_check_branch
    %40 = sbr.rel (0) target = $region21
  $region20: #{expert_gate_net.1} parent=0 // pred_region
    _
  $region21: #{expert_gate_net.1} parent=0 // pred_fallthru
    _
  // Predicated region
  $region22: #{expert_gate_net.1} parent=0 // pred_check
    _
  $region23: #{expert_gate_net.1} parent=0 // pred_check_branch
    %42 = sbr.rel (0) target = $region25
  $region24: #{expert_gate_net.1} parent=0 // pred_region
    _
  $region25: #{expert_gate_net.1} parent=0 // pred_fallthru
    _
  // Predicated region
  $region26: #{expert_gate_net.1} parent=0 // pred_check
    _
  $region27: #{expert_gate_net.1} parent=0 // pred_check_branch
    %44 = sbr.rel (0) target = $region29
  $region28: #{expert_gate_net.1} parent=0 // pred_region
    _
  $region29: #{expert_gate_net.1} parent=0 // pred_fallthru
    _
  // Predicated region
  $region30: #{expert_gate_net.1} parent=0 // pred_check
    _
  $region31: #{expert_gate_net.1} parent=0 // pred_check_branch
    %46 = sbr.rel (0) target = $region33
  $region32: #{expert_gate_net.1} parent=0 // pred_region
    _
  $region33: #{expert_gate_net.1} parent=0 // pred_fallthru
    _
  // Predicated region
  $region34: #{expert_gate_net.1} parent=0 // pred_check
    _
  $region35: #{expert_gate_net.1} parent=0 // pred_check_branch
    %48 = sbr.rel (0) target = $region37
  $region36: #{expert_gate_net.1} parent=0 // pred_region
    _
  $region37: #{expert_gate_net.1} parent=0 // pred_fallthru
    _
  // Predicated region
  $region38: #{expert_gate_net.1} parent=0 // pred_check
    _
  $region39: #{expert_gate_net.1} parent=0 // pred_check_branch
    %50 = sbr.rel (0) target = $region41
  $region40: #{expert_gate_net.1} parent=0 // pred_region
    _
  $region41: #{expert_gate_net.1} parent=0 // pred_fallthru
    _
  // Predicated region
  $region42: #{expert_gate_net.1} parent=0 // pred_check
    _
  $region43: #{expert_gate_net.1} parent=0 // pred_check_branch
    %52 = sbr.rel (0) target = $region45
  $region44: #{expert_gate_net.1} parent=0 // pred_region
    _
  $region45: #{expert_gate_net.1} parent=0 // pred_fallthru
    _
  // Predicated region
  $region46: #{expert_gate_net.1} parent=0 // pred_check
    _
  $region47: #{expert_gate_net.1} parent=0 // pred_check_branch
    %54 = sbr.rel (0) target = $region49
  $region48: #{expert_gate_net.1} parent=0 // pred_region
    _
  $region49: #{expert_gate_net.1} parent=0 // pred_fallthru
    _
  // Predicated region
  $region50: #{expert_gate_net.1} parent=0 // pred_check
    _
  $region51: #{expert_gate_net.1} parent=0 // pred_check_branch
    %56 = sbr.rel (0) target = $region53
  $region52: #{expert_gate_net.1} parent=0 // pred_region
    _
  $region53: #{expert_gate_net.1} parent=0 // pred_fallthru
    _
  // Predicated region
  $region54: #{expert_gate_net.1} parent=0 // pred_check
    _
  $region55: #{expert_gate_net.1} parent=0 // pred_check_branch
    %58 = sbr.rel (0) target = $region57
  $region56: #{expert_gate_net.1} parent=0 // pred_region
    _
  $region57: #{expert_gate_net.1} parent=0 // pred_fallthru
    _
  // Predicated region
  $region58: #{expert_gate_net.1} parent=0 // pred_check
    _
  $region59: #{expert_gate_net.1} parent=0 // pred_check_branch
    %60 = sbr.rel (0) target = $region61
  $region60: #{expert_gate_net.1} parent=0 // pred_region
    _
  $region61: #{expert_gate_net.1} parent=0 // pred_fallthru
    _
  // Predicated region
  $region62: #{expert_gate_net.1} parent=0 // pred_check
    _
  $region63: #{expert_gate_net.1} parent=0 // pred_check_branch
    %62 = sbr.rel (0) target = $region65
  $region64: #{expert_gate_net.1} parent=0 // pred_region
    _
  $region65: #{expert_gate_net.1} parent=0 // pred_fallthru
    _
  // Predicated region
  $region66: #{expert_gate_net.1} parent=0 // pred_check
    _
  $region67: #{expert_gate_net.1} parent=0 // pred_check_branch
    %64 = sbr.rel (0) target = $region69
  $region68: #{expert_gate_net.1} parent=0 // pred_region
    _
  $region69: #{expert_gate_net.1} parent=0 // pred_fallthru
    _
  // Predicated region
  $region70: #{expert_gate_net.1} parent=0 // pred_check
    _
  $region71: #{expert_gate_net.1} parent=0 // pred_check_branch
    %66 = sbr.rel (0) target = $region73
  $region72: #{expert_gate_net.1} parent=0 // pred_region
    _
  $region73: #{expert_gate_net.1} parent=0 // pred_fallthru
    _
  // Predicated region
  $region74: #{expert_gate_net.1} parent=0 // pred_check
    _
  $region75: #{expert_gate_net.1} parent=0 // pred_check_branch
    %68 = sbr.rel (0) target = $region77
  $region76: #{expert_gate_net.1} parent=0 // pred_region
    _
  $region77: #{expert_gate_net.1} parent=0 // pred_fallthru
    _
  // Predicated region
  $region78: #{expert_gate_net.1} parent=0 // pred_check
    _
  $region79: #{expert_gate_net.1} parent=0 // pred_check_branch
    %70 = sbr.rel (0) target = $region81
  $region80: #{expert_gate_net.1} parent=0 // pred_region
    _
  $region81: #{expert_gate_net.1} parent=0 // pred_fallthru
    _
  // Predicated region
  $region82: #{expert_gate_net.1} parent=0 // pred_check
    _
  $region83: #{expert_gate_net.1} parent=0 // pred_check_branch
    %72 = sbr.rel (0) target = $region85
  $region84: #{expert_gate_net.1} parent=0 // pred_region
    _
  $region85: #{expert_gate_net.1} parent=0 // pred_fallthru
    _
  // Predicated region
  $region86: #{expert_gate_net.1} parent=0 // pred_check
    _
  $region87: #{expert_gate_net.1} parent=0 // pred_check_branch
    %74 = sbr.rel (0) target = $region89
  $region88: #{expert_gate_net.1} parent=0 // pred_region
    _
  $region89: #{expert_gate_net.1} parent=0 // pred_fallthru
    _
  // Predicated region
  $region90: #{expert_gate_net.1} parent=0 // pred_check
    _
  $region91: #{expert_gate_net.1} parent=0 // pred_check_branch
    %76 = sbr.rel (0) target = $region93
  $region92: #{expert_gate_net.1} parent=0 // pred_region
    _
  $region93: #{expert_gate_net.1} parent=0 // pred_fallthru
    _
  // Predicated region
  $region94: #{expert_gate_net.1} parent=0 // pred_check
    _
  $region95: #{expert_gate_net.1} parent=0 // pred_check_branch
    %78 = sbr.rel (0) target = $region97
  $region96: #{expert_gate_net.1} parent=0 // pred_region
    _
  $region97: #{expert_gate_net.1} parent=0 // pred_fallthru
    _
  // Predicated region
  $region98: #{expert_gate_net.1} parent=0 // pred_check
    _
  $region99: #{expert_gate_net.1} parent=0 // pred_check_branch
    %80 = sbr.rel (0) target = $region101
  $region100: #{expert_gate_net.1} parent=0 // pred_region
    _
  $region101: #{expert_gate_net.1} parent=0 // pred_fallthru
    _
  // Predicated region
  $region102: #{expert_gate_net.1} parent=0 // pred_check
    _
  $region103: #{expert_gate_net.1} parent=0 // pred_check_branch
    %82 = sbr.rel (0) target = $region105
  $region104: #{expert_gate_net.1} parent=0 // pred_region
    _
  $region105: #{expert_gate_net.1} parent=0 // pred_fallthru
    _
  %v83 = vld [vmem:[%s0] sm:$0xff]
  %v84 = vld [vmem:[%s1] sm:$0x7f]
  %v85 = vld [vmem:[%s2] sm:$0x1]
  %v86 = vld [vmem:[%s3] sm:$0x1]
  %v87 = vld [vmem:[%s3 + $0x1] sm:$0x1]
  %v88 = vld [vmem:[%s3 + $0x2] sm:$0x1]
  %v89 = vld [vmem:[%s3 + $0x3] sm:$0x1]
  %v90 = vld [vmem:[%s3 + $0x4] sm:$0x1]
  %v91 = vld [vmem:[%s3 + $0x5] sm:$0x1]
  %v92 = vld [vmem:[%s3 + $0x6] sm:$0x1]
  %v93 = vld [vmem:[%s3 + $0x7] sm:$0x1]
  %v94 = vld [vmem:[%s4] sm:$0x1]
  %v95 = vld [vmem:[%s4 + $0x1] sm:$0x1]
  %v96 = vld [vmem:[%s4 + $0x2] sm:$0x1]
  %v97 = vld [vmem:[%s4 + $0x3] sm:$0x1]
  %v98 = vld [vmem:[%s4 + $0x4] sm:$0x1]
  %v99 = vld [vmem:[%s4 + $0x5] sm:$0x1]
  %v100 = vld [vmem:[%s4 + $0x6] sm:$0x1]
  %v101 = vld [vmem:[%s4 + $0x7] sm:$0x1]
  %v102 = vld [vmem:[%s5] sm:$0x1]
  %v103 = vld [vmem:[%s5 + $0x1] sm:$0x1]
  %v104 = vld [vmem:[%s5 + $0x2] sm:$0x1]
  %v105 = vld [vmem:[%s5 + $0x3] sm:$0x1]
  %v106 = vld [vmem:[%s5 + $0x4] sm:$0x1]
  %v107 = vld [vmem:[%s5 + $0x5] sm:$0x1]
  %v108 = vld [vmem:[%s5 + $0x6] sm:$0x1]
  %v109 = vld [vmem:[%s5 + $0x7] sm:$0x1]
  %v110 = vld [vmem:[%s16] sm:$0xff]
  %v111 = vld [vmem:[%s17] sm:$0xff]
  %v112 = vld [vmem:[%s18] sm:$0xff]
  %vm113 = vcmask 56320
  %v115 = vsel %vm113, %v83, 0
  %vm117 = vcmask 1046528
  %v119 = vsel %vm117, %v84, 0
  %121 = vmatpush.msra.mxu0 0.0
  %122 = vmatpush.msra.mxu0 0.0
  %123 = vmatpush.msra.mxu0 0.0
  %124 = vmatpush.msra.mxu0 0.0
  %125 = vmatpush.msra.mxu0 0.0
  %126 = vmatpush.msra.mxu0 0.0
  %127 = vmatpush.msra.mxu0 0.0
  %128 = vmatpush.msra.mxu0 0.0
  %129 = vmatpush.msra.mxu0 0.0
  %130 = vmatpush.msra.mxu0 0.0
  %131 = vmatpush.msra.mxu0 0.0
  %132 = vmatpush.msra.mxu0 0.0
  %133 = vmatpush.msra.mxu0 0.0
  %134 = vmatpush.msra.mxu0 0.0
  %135 = vmatpush.msra.mxu0 0.0
  %136 = vmatpush.msra.mxu0 %v119
  %137 = vmatmul.f32.gmra.mxu0 %v115
  %v138 = vpop.f32.mrf.mxu0
  %v139 = vadd.f32 0.0, %v138
  %140 = vdwg.mxu0
  %142 = vrot.lane.b32.xlu0 %v139, 120
  %v143 = vpop.permute.xlu0 %142
  %145 = vrot.lane.b32.xlu0 %v139, 112
  %v146 = vpop.permute.xlu0 %145
  %148 = vrot.lane.b32.xlu0 %v139, 104
  %v149 = vpop.permute.xlu0 %148
  %151 = vrot.lane.b32.xlu0 %v139, 96
  %v152 = vpop.permute.xlu0 %151
  %154 = vrot.lane.b32.xlu0 %v139, 88
  %v155 = vpop.permute.xlu0 %154
  %157 = vrot.lane.b32.xlu0 %v139, 80
  %v158 = vpop.permute.xlu0 %157
  %160 = vrot.lane.b32.xlu0 %v139, 72
  %v161 = vpop.permute.xlu0 %160
  %v171 = vperm.slane %v94, 0
  %v172 = vperm.slane %v95, 0
  %v173 = vperm.slane %v96, 0
  %v174 = vperm.slane %v97, 0
  %v175 = vperm.slane %v98, 0
  %v176 = vperm.slane %v99, 0
  %v177 = vperm.slane %v100, 0
  %v178 = vperm.slane %v101, 0
  %v187 = vmul.f32 %v139, %v171
  %v188 = vmul.f32 %v143, %v172
  %v189 = vmul.f32 %v146, %v173
  %v190 = vmul.f32 %v149, %v174
  %v191 = vmul.f32 %v152, %v175
  %v192 = vmul.f32 %v155, %v176
  %v193 = vmul.f32 %v158, %v177
  %v194 = vmul.f32 %v161, %v178
  %vm195 = vcmask 64512
  %v196 = vsel %vm195, %v187, 0.0
  %197 = vadd.xlane.f32.xlu0 %v196
  %v198 = vpop.xlane.xlu0 %197
  %v199 = vsel %vm195, %v188, 0.0
  %200 = vadd.xlane.f32.xlu0 %v199
  %v201 = vpop.xlane.xlu0 %200
  %v202 = vsel %vm195, %v189, 0.0
  %203 = vadd.xlane.f32.xlu0 %v202
  %v204 = vpop.xlane.xlu0 %203
  %v205 = vsel %vm195, %v190, 0.0
  %206 = vadd.xlane.f32.xlu0 %v205
  %v207 = vpop.xlane.xlu0 %206
  %v208 = vsel %vm195, %v191, 0.0
  %209 = vadd.xlane.f32.xlu0 %v208
  %v210 = vpop.xlane.xlu0 %209
  %v211 = vsel %vm195, %v192, 0.0
  %212 = vadd.xlane.f32.xlu0 %v211
  %v213 = vpop.xlane.xlu0 %212
  %v214 = vsel %vm195, %v193, 0.0
  %215 = vadd.xlane.f32.xlu0 %v214
  %v216 = vpop.xlane.xlu0 %215
  %v217 = vsel %vm195, %v194, 0.0
  %218 = vadd.xlane.f32.xlu0 %v217
  %v219 = vpop.xlane.xlu0 %218
  %v221 = vsel %vm195, %v86, 0
  %v223 = vsel %vm195, %v139, 0
  %225 = vmatpush.xpose.msra.mxu0 0.0
  %226 = vmatpush.xpose.msra.mxu0 0.0
  %227 = vmatpush.xpose.msra.mxu0 0.0
  %228 = vmatpush.xpose.msra.mxu0 0.0
  %229 = vmatpush.xpose.msra.mxu0 0.0
  %230 = vmatpush.xpose.msra.mxu0 0.0
  %231 = vmatpush.xpose.msra.mxu0 0.0
  %232 = vmatpush.xpose.msra.mxu0 0.0
  %233 = vmatpush.xpose.msra.mxu0 0.0
  %234 = vmatpush.xpose.msra.mxu0 0.0
  %235 = vmatpush.xpose.msra.mxu0 0.0
  %236 = vmatpush.xpose.msra.mxu0 0.0
  %237 = vmatpush.xpose.msra.mxu0 0.0
  %238 = vmatpush.xpose.msra.mxu0 0.0
  %239 = vmatpush.xpose.msra.mxu0 0.0
  %240 = vmatpush.xpose.msra.mxu0 %v223
  %241 = vmatmul.f32.gmra.mxu0 %v221
  %v242 = vpop.f32.mrf.mxu0
  %v243 = vadd.f32 0.0, %v242
  %244 = vdwg.mxu0
  %v246 = vsel %vm195, %v87, 0
  %v248 = vsel %vm195, %v143, 0
  %250 = vmatpush.xpose.msra.mxu0 0.0
  %251 = vmatpush.xpose.msra.mxu0 0.0
  %252 = vmatpush.xpose.msra.mxu0 0.0
  %253 = vmatpush.xpose.msra.mxu0 0.0
  %254 = vmatpush.xpose.msra.mxu0 0.0
  %255 = vmatpush.xpose.msra.mxu0 0.0
  %256 = vmatpush.xpose.msra.mxu0 0.0
  %257 = vmatpush.xpose.msra.mxu0 0.0
  %258 = vmatpush.xpose.msra.mxu0 0.0
  %259 = vmatpush.xpose.msra.mxu0 0.0
  %260 = vmatpush.xpose.msra.mxu0 0.0
  %261 = vmatpush.xpose.msra.mxu0 0.0
  %262 = vmatpush.xpose.msra.mxu0 0.0
  %263 = vmatpush.xpose.msra.mxu0 0.0
  %264 = vmatpush.xpose.msra.mxu0 0.0
  %265 = vmatpush.xpose.msra.mxu0 %v248
  %266 = vmatmul.f32.gmra.mxu0 %v246
  %v267 = vpop.f32.mrf.mxu0
  %v268 = vadd.f32 0.0, %v267
  %269 = vdwg.mxu0
  %v271 = vsel %vm195, %v88, 0
  %v273 = vsel %vm195, %v146, 0
  %275 = vmatpush.xpose.msra.mxu0 0.0
  %276 = vmatpush.xpose.msra.mxu0 0.0
  %277 = vmatpush.xpose.msra.mxu0 0.0
  %278 = vmatpush.xpose.msra.mxu0 0.0
  %279 = vmatpush.xpose.msra.mxu0 0.0
  %280 = vmatpush.xpose.msra.mxu0 0.0
  %281 = vmatpush.xpose.msra.mxu0 0.0
  %282 = vmatpush.xpose.msra.mxu0 0.0
  %283 = vmatpush.xpose.msra.mxu0 0.0
  %284 = vmatpush.xpose.msra.mxu0 0.0
  %285 = vmatpush.xpose.msra.mxu0 0.0
  %286 = vmatpush.xpose.msra.mxu0 0.0
  %287 = vmatpush.xpose.msra.mxu0 0.0
  %288 = vmatpush.xpose.msra.mxu0 0.0
  %289 = vmatpush.xpose.msra.mxu0 0.0
  %290 = vmatpush.xpose.msra.mxu0 %v273
  %291 = vmatmul.f32.gmra.mxu0 %v271
  %v292 = vpop.f32.mrf.mxu0
  %v293 = vadd.f32 0.0, %v292
  %294 = vdwg.mxu0
  %v296 = vsel %vm195, %v89, 0
  %v298 = vsel %vm195, %v149, 0
  %300 = vmatpush.xpose.msra.mxu0 0.0
  %301 = vmatpush.xpose.msra.mxu0 0.0
  %302 = vmatpush.xpose.msra.mxu0 0.0
  %303 = vmatpush.xpose.msra.mxu0 0.0
  %304 = vmatpush.xpose.msra.mxu0 0.0
  %305 = vmatpush.xpose.msra.mxu0 0.0
  %306 = vmatpush.xpose.msra.mxu0 0.0
  %307 = vmatpush.xpose.msra.mxu0 0.0
  %308 = vmatpush.xpose.msra.mxu0 0.0
  %309 = vmatpush.xpose.msra.mxu0 0.0
  %310 = vmatpush.xpose.msra.mxu0 0.0
  %311 = vmatpush.xpose.msra.mxu0 0.0
  %312 = vmatpush.xpose.msra.mxu0 0.0
  %313 = vmatpush.xpose.msra.mxu0 0.0
  %314 = vmatpush.xpose.msra.mxu0 0.0
  %315 = vmatpush.xpose.msra.mxu0 %v298
  %316 = vmatmul.f32.gmra.mxu0 %v296
  %v317 = vpop.f32.mrf.mxu0
  %v318 = vadd.f32 0.0, %v317
  %319 = vdwg.mxu0
  %v321 = vsel %vm195, %v90, 0
  %v323 = vsel %vm195, %v152, 0
  %325 = vmatpush.xpose.msra.mxu0 0.0
  %326 = vmatpush.xpose.msra.mxu0 0.0
  %327 = vmatpush.xpose.msra.mxu0 0.0
  %328 = vmatpush.xpose.msra.mxu0 0.0
  %329 = vmatpush.xpose.msra.mxu0 0.0
  %330 = vmatpush.xpose.msra.mxu0 0.0
  %331 = vmatpush.xpose.msra.mxu0 0.0
  %332 = vmatpush.xpose.msra.mxu0 0.0
  %333 = vmatpush.xpose.msra.mxu0 0.0
  %334 = vmatpush.xpose.msra.mxu0 0.0
  %335 = vmatpush.xpose.msra.mxu0 0.0
  %336 = vmatpush.xpose.msra.mxu0 0.0
  %337 = vmatpush.xpose.msra.mxu0 0.0
  %338 = vmatpush.xpose.msra.mxu0 0.0
  %339 = vmatpush.xpose.msra.mxu0 0.0
  %340 = vmatpush.xpose.msra.mxu0 %v323
  %341 = vmatmul.f32.gmra.mxu0 %v321
  %v342 = vpop.f32.mrf.mxu0
  %v343 = vadd.f32 0.0, %v342
  %344 = vdwg.mxu0
  %v346 = vsel %vm195, %v91, 0
  %v348 = vsel %vm195, %v155, 0
  %350 = vmatpush.xpose.msra.mxu0 0.0
  %351 = vmatpush.xpose.msra.mxu0 0.0
  %352 = vmatpush.xpose.msra.mxu0 0.0
  %353 = vmatpush.xpose.msra.mxu0 0.0
  %354 = vmatpush.xpose.msra.mxu0 0.0
  %355 = vmatpush.xpose.msra.mxu0 0.0
  %356 = vmatpush.xpose.msra.mxu0 0.0
  %357 = vmatpush.xpose.msra.mxu0 0.0
  %358 = vmatpush.xpose.msra.mxu0 0.0
  %359 = vmatpush.xpose.msra.mxu0 0.0
  %360 = vmatpush.xpose.msra.mxu0 0.0
  %361 = vmatpush.xpose.msra.mxu0 0.0
  %362 = vmatpush.xpose.msra.mxu0 0.0
  %363 = vmatpush.xpose.msra.mxu0 0.0
  %364 = vmatpush.xpose.msra.mxu0 0.0
  %365 = vmatpush.xpose.msra.mxu0 %v348
  %366 = vmatmul.f32.gmra.mxu0 %v346
  %v367 = vpop.f32.mrf.mxu0
  %v368 = vadd.f32 0.0, %v367
  %369 = vdwg.mxu0
  %v371 = vsel %vm195, %v92, 0
  %v373 = vsel %vm195, %v158, 0
  %375 = vmatpush.xpose.msra.mxu0 0.0
  %376 = vmatpush.xpose.msra.mxu0 0.0
  %377 = vmatpush.xpose.msra.mxu0 0.0
  %378 = vmatpush.xpose.msra.mxu0 0.0
  %379 = vmatpush.xpose.msra.mxu0 0.0
  %380 = vmatpush.xpose.msra.mxu0 0.0
  %381 = vmatpush.xpose.msra.mxu0 0.0
  %382 = vmatpush.xpose.msra.mxu0 0.0
  %383 = vmatpush.xpose.msra.mxu0 0.0
  %384 = vmatpush.xpose.msra.mxu0 0.0
  %385 = vmatpush.xpose.msra.mxu0 0.0
  %386 = vmatpush.xpose.msra.mxu0 0.0
  %387 = vmatpush.xpose.msra.mxu0 0.0
  %388 = vmatpush.xpose.msra.mxu0 0.0
  %389 = vmatpush.xpose.msra.mxu0 0.0
  %390 = vmatpush.xpose.msra.mxu0 %v373
  %391 = vmatmul.f32.gmra.mxu0 %v371
  %v392 = vpop.f32.mrf.mxu0
  %v393 = vadd.f32 0.0, %v392
  %394 = vdwg.mxu0
  %v396 = vsel %vm195, %v93, 0
  %v398 = vsel %vm195, %v161, 0
  %400 = vmatpush.xpose.msra.mxu0 0.0
  %401 = vmatpush.xpose.msra.mxu0 0.0
  %402 = vmatpush.xpose.msra.mxu0 0.0
  %403 = vmatpush.xpose.msra.mxu0 0.0
  %404 = vmatpush.xpose.msra.mxu0 0.0
  %405 = vmatpush.xpose.msra.mxu0 0.0
  %406 = vmatpush.xpose.msra.mxu0 0.0
  %407 = vmatpush.xpose.msra.mxu0 0.0
  %408 = vmatpush.xpose.msra.mxu0 0.0
  %409 = vmatpush.xpose.msra.mxu0 0.0
  %410 = vmatpush.xpose.msra.mxu0 0.0
  %411 = vmatpush.xpose.msra.mxu0 0.0
  %412 = vmatpush.xpose.msra.mxu0 0.0
  %413 = vmatpush.xpose.msra.mxu0 0.0
  %414 = vmatpush.xpose.msra.mxu0 0.0
  %415 = vmatpush.xpose.msra.mxu0 %v398
  %416 = vmatmul.f32.gmra.mxu0 %v396
  %v417 = vpop.f32.mrf.mxu0
  %v418 = vadd.f32 0.0, %v417
  %419 = vdwg.mxu0
  %v420 = vperm.slane %v243, 0
  %v421 = vperm.slane %v268, 0
  %v422 = vperm.slane %v293, 0
  %v423 = vperm.slane %v318, 0
  %v424 = vperm.slane %v343, 0
  %v425 = vperm.slane %v368, 0
  %v426 = vperm.slane %v393, 0
  %v427 = vperm.slane %v418, 0
  %v428 = vadd.f32 %v198, %v420
  %v429 = vadd.f32 %v201, %v421
  %v430 = vadd.f32 %v204, %v422
  %v431 = vadd.f32 %v207, %v423
  %v432 = vadd.f32 %v210, %v424
  %v433 = vadd.f32 %v213, %v425
  %v434 = vadd.f32 %v216, %v426
  %v435 = vadd.f32 %v219, %v427
  %v444 = vperm.slane %v102, 0
  %v445 = vperm.slane %v103, 0
  %v446 = vperm.slane %v104, 0
  %v447 = vperm.slane %v105, 0
  %v448 = vperm.slane %v106, 0
  %v449 = vperm.slane %v107, 0
  %v450 = vperm.slane %v108, 0
  %v451 = vperm.slane %v109, 0
  %452 = vset.pattern.permute.xlu0 0
  %453 = vperm.xlu0 %452, %v444
  %v454 = vpop.permute.xlu0 %453
  %456 = vset.pattern.permute.xlu0 0
  %457 = vperm.xlu0 %456, %v445
  %v458 = vpop.permute.xlu0 %457
  %460 = vset.pattern.permute.xlu0 0
  %461 = vperm.xlu0 %460, %v446
  %v462 = vpop.permute.xlu0 %461
  %464 = vset.pattern.permute.xlu0 0
  %465 = vperm.xlu0 %464, %v447
  %v466 = vpop.permute.xlu0 %465
  %468 = vset.pattern.permute.xlu0 0
  %469 = vperm.xlu0 %468, %v448
  %v470 = vpop.permute.xlu0 %469
  %472 = vset.pattern.permute.xlu0 0
  %473 = vperm.xlu0 %472, %v449
  %v474 = vpop.permute.xlu0 %473
  %476 = vset.pattern.permute.xlu0 0
  %477 = vperm.xlu0 %476, %v450
  %v478 = vpop.permute.xlu0 %477
  %480 = vset.pattern.permute.xlu0 0
  %481 = vperm.xlu0 %480, %v451
  %v482 = vpop.permute.xlu0 %481
  %v484 = vmul.f32 %v454, %v111
  %v485 = vmul.f32 %v458, %v111
  %v486 = vmul.f32 %v462, %v111
  %v487 = vmul.f32 %v466, %v111
  %v488 = vmul.f32 %v470, %v111
  %v489 = vmul.f32 %v474, %v111
  %v490 = vmul.f32 %v478, %v111
  %v491 = vmul.f32 %v482, %v111
  %v492 = vadd.f32 %v428, %v484
  %v493 = vadd.f32 %v429, %v485
  %v494 = vadd.f32 %v430, %v486
  %v495 = vadd.f32 %v431, %v487
  %v496 = vadd.f32 %v432, %v488
  %v497 = vadd.f32 %v433, %v489
  %v498 = vadd.f32 %v434, %v490
  %v499 = vadd.f32 %v435, %v491
  %vm500 = vcmp.ge.f32.partialorder %v492, 0.0
  %vm501 = vcmp.ge.f32.partialorder %v493, 0.0
  %vm502 = vcmp.ge.f32.partialorder %v494, 0.0
  %vm503 = vcmp.ge.f32.partialorder %v495, 0.0
  %vm504 = vcmp.ge.f32.partialorder %v496, 0.0
  %vm505 = vcmp.ge.f32.partialorder %v497, 0.0
  %vm506 = vcmp.ge.f32.partialorder %v498, 0.0
  %vm507 = vcmp.ge.f32.partialorder %v499, 0.0
  %v508 = vmul.f32 %v492, 0.2
  %v509 = vmul.f32 %v493, 0.2
  %v510 = vmul.f32 %v494, 0.2
  %v511 = vmul.f32 %v495, 0.2
  %v512 = vmul.f32 %v496, 0.2
  %v513 = vmul.f32 %v497, 0.2
  %v514 = vmul.f32 %v498, 0.2
  %v515 = vmul.f32 %v499, 0.2
  %v516 = vsel %vm500, %v492, %v508
  %v517 = vsel %vm501, %v493, %v509
  %v518 = vsel %vm502, %v494, %v510
  %v519 = vsel %vm503, %v495, %v511
  %v520 = vsel %vm504, %v496, %v512
  %v521 = vsel %vm505, %v497, %v513
  %v522 = vsel %vm506, %v498, %v514
  %v523 = vsel %vm507, %v499, %v515
  %vm524 = vcmp.gt.f32.partialorder %v110, 0.0
  %v525 = vsel %vm524, 1, 0
  %vm526 = vcmp.eq.s32.totalorder %v525, 1
  %v527 = vsel %vm526, %v516, -1e+30
  %v528 = vsel %vm526, %v517, -1e+30
  %v529 = vsel %vm526, %v518, -1e+30
  %v530 = vsel %vm526, %v519, -1e+30
  %v531 = vsel %vm526, %v520, -1e+30
  %v532 = vsel %vm526, %v521, -1e+30
  %v533 = vsel %vm526, %v522, -1e+30
  %v534 = vsel %vm526, %v523, -1e+30
  %v535 = vsel %vm195, %v527, -inf
  %536 = vmax.xlane.f32.xlu0 %v535
  %v537 = vpop.xlane.xlu0 %536
  %v538 = vsel %vm195, %v528, -inf
  %539 = vmax.xlane.f32.xlu0 %v538
  %v540 = vpop.xlane.xlu0 %539
  %v541 = vsel %vm195, %v529, -inf
  %542 = vmax.xlane.f32.xlu0 %v541
  %v543 = vpop.xlane.xlu0 %542
  %v544 = vsel %vm195, %v530, -inf
  %545 = vmax.xlane.f32.xlu0 %v544
  %v546 = vpop.xlane.xlu0 %545
  %v547 = vsel %vm195, %v531, -inf
  %548 = vmax.xlane.f32.xlu0 %v547
  %v549 = vpop.xlane.xlu0 %548
  %v550 = vsel %vm195, %v532, -inf
  %551 = vmax.xlane.f32.xlu0 %v550
  %v552 = vpop.xlane.xlu0 %551
  %v553 = vsel %vm195, %v533, -inf
  %554 = vmax.xlane.f32.xlu0 %v553
  %v555 = vpop.xlane.xlu0 %554
  %v556 = vsel %vm195, %v534, -inf
  %557 = vmax.xlane.f32.xlu0 %v556
  %v558 = vpop.xlane.xlu0 %557
  %v559 = vsub.f32 %v527, %v537
  %v560 = vsub.f32 %v528, %v540
  %v561 = vsub.f32 %v529, %v543
  %v562 = vsub.f32 %v530, %v546
  %v563 = vsub.f32 %v531, %v549
  %v564 = vsub.f32 %v532, %v552
  %v565 = vsub.f32 %v533, %v555
  %v566 = vsub.f32 %v534, %v558
  %v567 = vmul.f32 %v559, 1.442695
  %v568 = vpow.pop %v567
  %v569 = vmul.f32 %v560, 1.442695
  %v570 = vpow.pop %v569
  %v571 = vmul.f32 %v561, 1.442695
  %v572 = vpow.pop %v571
  %v573 = vmul.f32 %v562, 1.442695
  %v574 = vpow.pop %v573
  %v575 = vmul.f32 %v563, 1.442695
  %v576 = vpow.pop %v575
  %v577 = vmul.f32 %v564, 1.442695
  %v578 = vpow.pop %v577
  %v579 = vmul.f32 %v565, 1.442695
  %v580 = vpow.pop %v579
  %v581 = vmul.f32 %v566, 1.442695
  %v582 = vpow.pop %v581
  %v583 = vsel %vm195, %v568, 0.0
  %584 = vadd.xlane.f32.xlu0 %v583
  %v585 = vpop.xlane.xlu0 %584
  %v586 = vsel %vm195, %v570, 0.0
  %587 = vadd.xlane.f32.xlu0 %v586
  %v588 = vpop.xlane.xlu0 %587
  %v589 = vsel %vm195, %v572, 0.0
  %590 = vadd.xlane.f32.xlu0 %v589
  %v591 = vpop.xlane.xlu0 %590
  %v592 = vsel %vm195, %v574, 0.0
  %593 = vadd.xlane.f32.xlu0 %v592
  %v594 = vpop.xlane.xlu0 %593
  %v595 = vsel %vm195, %v576, 0.0
  %596 = vadd.xlane.f32.xlu0 %v595
  %v597 = vpop.xlane.xlu0 %596
  %v598 = vsel %vm195, %v578, 0.0
  %599 = vadd.xlane.f32.xlu0 %v598
  %v600 = vpop.xlane.xlu0 %599
  %v601 = vsel %vm195, %v580, 0.0
  %602 = vadd.xlane.f32.xlu0 %v601
  %v603 = vpop.xlane.xlu0 %602
  %v604 = vsel %vm195, %v582, 0.0
  %605 = vadd.xlane.f32.xlu0 %v604
  %v606 = vpop.xlane.xlu0 %605
  %v607 = vrcp.pop %v585
  %v608 = vrcp.pop %v588
  %v609 = vrcp.pop %v591
  %v610 = vrcp.pop %v594
  %v611 = vrcp.pop %v597
  %v612 = vrcp.pop %v600
  %v613 = vrcp.pop %v603
  %v614 = vrcp.pop %v606
  %v615 = vmul.f32 %v568, %v607
  %v616 = vmul.f32 %v570, %v608
  %v617 = vmul.f32 %v572, %v609
  %v618 = vmul.f32 %v574, %v610
  %v619 = vmul.f32 %v576, %v611
  %v620 = vmul.f32 %v578, %v612
  %v621 = vmul.f32 %v580, %v613
  %v622 = vmul.f32 %v582, %v614
  %v624 = vsel %vm195, %v615, 0
  %626 = vmatpush.msra.mxu0 0.0
  %627 = vmatpush.msra.mxu0 0.0
  %628 = vmatpush.msra.mxu0 0.0
  %629 = vmatpush.msra.mxu0 0.0
  %630 = vmatpush.msra.mxu0 0.0
  %631 = vmatpush.msra.mxu0 0.0
  %632 = vmatpush.msra.mxu0 0.0
  %633 = vmatpush.msra.mxu0 0.0
  %634 = vmatpush.msra.mxu0 0.0
  %635 = vmatpush.msra.mxu0 0.0
  %636 = vmatpush.msra.mxu0 0.0
  %637 = vmatpush.msra.mxu0 0.0
  %638 = vmatpush.msra.mxu0 0.0
  %639 = vmatpush.msra.mxu0 0.0
  %640 = vmatpush.msra.mxu0 0.0
  %641 = vmatpush.msra.mxu0 %v139
  %642 = vmatmul.f32.gmra.mxu0 %v624
  %v643 = vpop.f32.mrf.mxu0
  %v644 = vadd.f32 0.0, %v643
  %645 = vdwg.mxu0
  %v647 = vsel %vm195, %v616, 0
  %649 = vmatpush.msra.mxu0 0.0
  %650 = vmatpush.msra.mxu0 0.0
  %651 = vmatpush.msra.mxu0 0.0
  %652 = vmatpush.msra.mxu0 0.0
  %653 = vmatpush.msra.mxu0 0.0
  %654 = vmatpush.msra.mxu0 0.0
  %655 = vmatpush.msra.mxu0 0.0
  %656 = vmatpush.msra.mxu0 0.0
  %657 = vmatpush.msra.mxu0 0.0
  %658 = vmatpush.msra.mxu0 0.0
  %659 = vmatpush.msra.mxu0 0.0
  %660 = vmatpush.msra.mxu0 0.0
  %661 = vmatpush.msra.mxu0 0.0
  %662 = vmatpush.msra.mxu0 0.0
  %663 = vmatpush.msra.mxu0 0.0
  %664 = vmatpush.msra.mxu0 %v143
  %665 = vmatmul.f32.gmra.mxu0 %v647
  %v666 = vpop.f32.mrf.mxu0
  %v667 = vadd.f32 0.0, %v666
  %668 = vdwg.mxu0
  %v670 = vsel %vm195, %v617, 0
  %672 = vmatpush.msra.mxu0 0.0
  %673 = vmatpush.msra.mxu0 0.0
  %674 = vmatpush.msra.mxu0 0.0
  %675 = vmatpush.msra.mxu0 0.0
  %676 = vmatpush.msra.mxu0 0.0
  %677 = vmatpush.msra.mxu0 0.0
  %678 = vmatpush.msra.mxu0 0.0
  %679 = vmatpush.msra.mxu0 0.0
  %680 = vmatpush.msra.mxu0 0.0
  %681 = vmatpush.msra.mxu0 0.0
  %682 = vmatpush.msra.mxu0 0.0
  %683 = vmatpush.msra.mxu0 0.0
  %684 = vmatpush.msra.mxu0 0.0
  %685 = vmatpush.msra.mxu0 0.0
  %686 = vmatpush.msra.mxu0 0.0
  %687 = vmatpush.msra.mxu0 %v146
  %688 = vmatmul.f32.gmra.mxu0 %v670
  %v689 = vpop.f32.mrf.mxu0
  %v690 = vadd.f32 0.0, %v689
  %691 = vdwg.mxu0
  %v693 = vsel %vm195, %v618, 0
  %695 = vmatpush.msra.mxu0 0.0
  %696 = vmatpush.msra.mxu0 0.0
  %697 = vmatpush.msra.mxu0 0.0
  %698 = vmatpush.msra.mxu0 0.0
  %699 = vmatpush.msra.mxu0 0.0
  %700 = vmatpush.msra.mxu0 0.0
  %701 = vmatpush.msra.mxu0 0.0
  %702 = vmatpush.msra.mxu0 0.0
  %703 = vmatpush.msra.mxu0 0.0
  %704 = vmatpush.msra.mxu0 0.0
  %705 = vmatpush.msra.mxu0 0.0
  %706 = vmatpush.msra.mxu0 0.0
  %707 = vmatpush.msra.mxu0 0.0
  %708 = vmatpush.msra.mxu0 0.0
  %709 = vmatpush.msra.mxu0 0.0
  %710 = vmatpush.msra.mxu0 %v149
  %711 = vmatmul.f32.gmra.mxu0 %v693
  %v712 = vpop.f32.mrf.mxu0
  %v713 = vadd.f32 0.0, %v712
  %714 = vdwg.mxu0
  %v716 = vsel %vm195, %v619, 0
  %718 = vmatpush.msra.mxu0 0.0
  %719 = vmatpush.msra.mxu0 0.0
  %720 = vmatpush.msra.mxu0 0.0
  %721 = vmatpush.msra.mxu0 0.0
  %722 = vmatpush.msra.mxu0 0.0
  %723 = vmatpush.msra.mxu0 0.0
  %724 = vmatpush.msra.mxu0 0.0
  %725 = vmatpush.msra.mxu0 0.0
  %726 = vmatpush.msra.mxu0 0.0
  %727 = vmatpush.msra.mxu0 0.0
  %728 = vmatpush.msra.mxu0 0.0
  %729 = vmatpush.msra.mxu0 0.0
  %730 = vmatpush.msra.mxu0 0.0
  %731 = vmatpush.msra.mxu0 0.0
  %732 = vmatpush.msra.mxu0 0.0
  %733 = vmatpush.msra.mxu0 %v152
  %734 = vmatmul.f32.gmra.mxu0 %v716
  %v735 = vpop.f32.mrf.mxu0
  %v736 = vadd.f32 0.0, %v735
  %737 = vdwg.mxu0
  %v739 = vsel %vm195, %v620, 0
  %741 = vmatpush.msra.mxu0 0.0
  %742 = vmatpush.msra.mxu0 0.0
  %743 = vmatpush.msra.mxu0 0.0
  %744 = vmatpush.msra.mxu0 0.0
  %745 = vmatpush.msra.mxu0 0.0
  %746 = vmatpush.msra.mxu0 0.0
  %747 = vmatpush.msra.mxu0 0.0
  %748 = vmatpush.msra.mxu0 0.0
  %749 = vmatpush.msra.mxu0 0.0
  %750 = vmatpush.msra.mxu0 0.0
  %751 = vmatpush.msra.mxu0 0.0
  %752 = vmatpush.msra.mxu0 0.0
  %753 = vmatpush.msra.mxu0 0.0
  %754 = vmatpush.msra.mxu0 0.0
  %755 = vmatpush.msra.mxu0 0.0
  %756 = vmatpush.msra.mxu0 %v155
  %757 = vmatmul.f32.gmra.mxu0 %v739
  %v758 = vpop.f32.mrf.mxu0
  %v759 = vadd.f32 0.0, %v758
  %760 = vdwg.mxu0
  %v762 = vsel %vm195, %v621, 0
  %764 = vmatpush.msra.mxu0 0.0
  %765 = vmatpush.msra.mxu0 0.0
  %766 = vmatpush.msra.mxu0 0.0
  %767 = vmatpush.msra.mxu0 0.0
  %768 = vmatpush.msra.mxu0 0.0
  %769 = vmatpush.msra.mxu0 0.0
  %770 = vmatpush.msra.mxu0 0.0
  %771 = vmatpush.msra.mxu0 0.0
  %772 = vmatpush.msra.mxu0 0.0
  %773 = vmatpush.msra.mxu0 0.0
  %774 = vmatpush.msra.mxu0 0.0
  %775 = vmatpush.msra.mxu0 0.0
  %776 = vmatpush.msra.mxu0 0.0
  %777 = vmatpush.msra.mxu0 0.0
  %778 = vmatpush.msra.mxu0 0.0
  %779 = vmatpush.msra.mxu0 %v158
  %780 = vmatmul.f32.gmra.mxu0 %v762
  %v781 = vpop.f32.mrf.mxu0
  %v782 = vadd.f32 0.0, %v781
  %783 = vdwg.mxu0
  %v785 = vsel %vm195, %v622, 0
  %787 = vmatpush.msra.mxu0 0.0
  %788 = vmatpush.msra.mxu0 0.0
  %789 = vmatpush.msra.mxu0 0.0
  %790 = vmatpush.msra.mxu0 0.0
  %791 = vmatpush.msra.mxu0 0.0
  %792 = vmatpush.msra.mxu0 0.0
  %793 = vmatpush.msra.mxu0 0.0
  %794 = vmatpush.msra.mxu0 0.0
  %795 = vmatpush.msra.mxu0 0.0
  %796 = vmatpush.msra.mxu0 0.0
  %797 = vmatpush.msra.mxu0 0.0
  %798 = vmatpush.msra.mxu0 0.0
  %799 = vmatpush.msra.mxu0 0.0
  %800 = vmatpush.msra.mxu0 0.0
  %801 = vmatpush.msra.mxu0 0.0
  %802 = vmatpush.msra.mxu0 %v161
  %803 = vmatmul.f32.gmra.mxu0 %v785
  %v804 = vpop.f32.mrf.mxu0
  %v805 = vadd.f32 0.0, %v804
  %806 = vdwg.mxu0
  %808 = vset.pattern.permute.xlu0 0
  %809 = vperm.xlu0 %808, %v112
  %v810 = vpop.permute.xlu0 %809
  %v812 = vmul.f32 %v644, %v810
  %v813 = vmul.f32 %v667, %v810
  %v814 = vmul.f32 %v690, %v810
  %v815 = vmul.f32 %v713, %v810
  %v816 = vmul.f32 %v736, %v810
  %v817 = vmul.f32 %v759, %v810
  %v818 = vmul.f32 %v782, %v810
  %v819 = vmul.f32 %v805, %v810
  %821 = vrot.lane.b32.xlu0 %v813, 8
  %v822 = vpop.permute.xlu0 %821
  %825 = vrot.lane.b32.xlu0 %v814, 16
  %v826 = vpop.permute.xlu0 %825
  %829 = vrot.lane.b32.xlu0 %v815, 24
  %v830 = vpop.permute.xlu0 %829
  %833 = vrot.lane.b32.xlu0 %v816, 32
  %v834 = vpop.permute.xlu0 %833
  %837 = vrot.lane.b32.xlu0 %v817, 40
  %v838 = vpop.permute.xlu0 %837
  %841 = vrot.lane.b32.xlu0 %v818, 48
  %v842 = vpop.permute.xlu0 %841
  %845 = vrot.lane.b32.xlu0 %v819, 56
  %v846 = vpop.permute.xlu0 %845
  %v848 = vsel %vm195, %v812, %v822
  %vm849 = vcmask 130048
  %v850 = vsel %vm849, %v848, %v826
  %vm851 = vcmask 195584
  %v852 = vsel %vm851, %v850, %v830
  %vm853 = vcmask 261120
  %v854 = vsel %vm853, %v852, %v834
  %vm855 = vcmask 326656
  %v856 = vsel %vm855, %v854, %v838
  %vm857 = vcmask 392192
  %v858 = vsel %vm857, %v856, %v842
  %vm859 = vcmask 457728
  %v860 = vsel %vm859, %v858, %v846
  %v862 = vperm.slane %v85, 0
  %v864 = vadd.f32 %v860, %v862
  %v865 = vmax.f32 %v864, 0.0
  %v866 = vld [vmem:[%s6] sm:$0xff]
  %v867 = vld [vmem:[%s6 + $0x8] sm:$0xff]
  %v868 = vld [vmem:[%s6 + $0x10] sm:$0xff]
  %v869 = vld [vmem:[%s6 + $0x18] sm:$0xff]
  %v870 = vld [vmem:[%s6 + $0x20] sm:$0xff]
  %v871 = vld [vmem:[%s6 + $0x28] sm:$0xff]
  %v872 = vld [vmem:[%s6 + $0x30] sm:$0xff]
  %v873 = vld [vmem:[%s6 + $0x38] sm:$0xff]
  %v874 = vld [vmem:[%s7] sm:$0x1]
  %v875 = vld [vmem:[%s8] sm:$0x1]
  %v876 = vld [vmem:[%s8 + $0x1] sm:$0x1]
  %v877 = vld [vmem:[%s8 + $0x2] sm:$0x1]
  %v878 = vld [vmem:[%s8 + $0x3] sm:$0x1]
  %v879 = vld [vmem:[%s8 + $0x4] sm:$0x1]
  %v880 = vld [vmem:[%s8 + $0x5] sm:$0x1]
  %v881 = vld [vmem:[%s8 + $0x6] sm:$0x1]
  %v882 = vld [vmem:[%s8 + $0x7] sm:$0x1]
  %v883 = vld [vmem:[%s9] sm:$0x1]
  %v884 = vld [vmem:[%s9 + $0x1] sm:$0x1]
  %v885 = vld [vmem:[%s9 + $0x2] sm:$0x1]
  %v886 = vld [vmem:[%s9 + $0x3] sm:$0x1]
  %v887 = vld [vmem:[%s9 + $0x4] sm:$0x1]
  %v888 = vld [vmem:[%s9 + $0x5] sm:$0x1]
  %v889 = vld [vmem:[%s9 + $0x6] sm:$0x1]
  %v890 = vld [vmem:[%s9 + $0x7] sm:$0x1]
  %v891 = vld [vmem:[%s10] sm:$0x1]
  %v892 = vld [vmem:[%s10 + $0x1] sm:$0x1]
  %v893 = vld [vmem:[%s10 + $0x2] sm:$0x1]
  %v894 = vld [vmem:[%s10 + $0x3] sm:$0x1]
  %v895 = vld [vmem:[%s10 + $0x4] sm:$0x1]
  %v896 = vld [vmem:[%s10 + $0x5] sm:$0x1]
  %v897 = vld [vmem:[%s10 + $0x6] sm:$0x1]
  %v898 = vld [vmem:[%s10 + $0x7] sm:$0x1]
  %v899 = vld [vmem:[%s19] sm:$0xff]
  %v900 = vld [vmem:[%s20] sm:$0xff]
  %vm901 = vcmask 523264
  %v903 = vsel %vm901, %v865, 0
  %905 = vmatpush.msra.mxu0 0.0
  %906 = vmatpush.msra.mxu0 0.0
  %907 = vmatpush.msra.mxu0 0.0
  %908 = vmatpush.msra.mxu0 0.0
  %909 = vmatpush.msra.mxu0 0.0
  %910 = vmatpush.msra.mxu0 0.0
  %911 = vmatpush.msra.mxu0 0.0
  %912 = vmatpush.msra.mxu0 0.0
  %913 = vmatpush.msra.mxu0 %v873
  %914 = vmatpush.msra.mxu0 %v872
  %915 = vmatpush.msra.mxu0 %v871
  %916 = vmatpush.msra.mxu0 %v870
  %917 = vmatpush.msra.mxu0 %v869
  %918 = vmatpush.msra.mxu0 %v868
  %919 = vmatpush.msra.mxu0 %v867
  %920 = vmatpush.msra.mxu0 %v866
  %921 = vmatmul.f32.gmra.mxu0 %v903
  %v922 = vpop.f32.mrf.mxu0
  %v923 = vadd.f32 0.0, %v922
  %924 = vdwg.mxu0
  %926 = vrot.lane.b32.xlu0 %v923, 120
  %v927 = vpop.permute.xlu0 %926
  %929 = vrot.lane.b32.xlu0 %v923, 112
  %v930 = vpop.permute.xlu0 %929
  %932 = vrot.lane.b32.xlu0 %v923, 104
  %v933 = vpop.permute.xlu0 %932
  %935 = vrot.lane.b32.xlu0 %v923, 96
  %v936 = vpop.permute.xlu0 %935
  %938 = vrot.lane.b32.xlu0 %v923, 88
  %v939 = vpop.permute.xlu0 %938
  %941 = vrot.lane.b32.xlu0 %v923, 80
  %v942 = vpop.permute.xlu0 %941
  %944 = vrot.lane.b32.xlu0 %v923, 72
  %v945 = vpop.permute.xlu0 %944
  %v955 = vperm.slane %v883, 0
  %v956 = vperm.slane %v884, 0
  %v957 = vperm.slane %v885, 0
  %v958 = vperm.slane %v886, 0
  %v959 = vperm.slane %v887, 0
  %v960 = vperm.slane %v888, 0
  %v961 = vperm.slane %v889, 0
  %v962 = vperm.slane %v890, 0
  %v971 = vmul.f32 %v923, %v955
  %v972 = vmul.f32 %v927, %v956
  %v973 = vmul.f32 %v930, %v957
  %v974 = vmul.f32 %v933, %v958
  %v975 = vmul.f32 %v936, %v959
  %v976 = vmul.f32 %v939, %v960
  %v977 = vmul.f32 %v942, %v961
  %v978 = vmul.f32 %v945, %v962
  %v979 = vsel %vm195, %v971, 0.0
  %980 = vadd.xlane.f32.xlu0 %v979
  %v981 = vpop.xlane.xlu0 %980
  %v982 = vsel %vm195, %v972, 0.0
  %983 = vadd.xlane.f32.xlu0 %v982
  %v984 = vpop.xlane.xlu0 %983
  %v985 = vsel %vm195, %v973, 0.0
  %986 = vadd.xlane.f32.xlu0 %v985
  %v987 = vpop.xlane.xlu0 %986
  %v988 = vsel %vm195, %v974, 0.0
  %989 = vadd.xlane.f32.xlu0 %v988
  %v990 = vpop.xlane.xlu0 %989
  %v991 = vsel %vm195, %v975, 0.0
  %992 = vadd.xlane.f32.xlu0 %v991
  %v993 = vpop.xlane.xlu0 %992
  %v994 = vsel %vm195, %v976, 0.0
  %995 = vadd.xlane.f32.xlu0 %v994
  %v996 = vpop.xlane.xlu0 %995
  %v997 = vsel %vm195, %v977, 0.0
  %998 = vadd.xlane.f32.xlu0 %v997
  %v999 = vpop.xlane.xlu0 %998
  %v1000 = vsel %vm195, %v978, 0.0
  %1001 = vadd.xlane.f32.xlu0 %v1000
  %v1002 = vpop.xlane.xlu0 %1001
  %v1004 = vsel %vm195, %v875, 0
  %v1006 = vsel %vm195, %v923, 0
  %1008 = vmatpush.xpose.msra.mxu0 0.0
  %1009 = vmatpush.xpose.msra.mxu0 0.0
  %1010 = vmatpush.xpose.msra.mxu0 0.0
  %1011 = vmatpush.xpose.msra.mxu0 0.0
  %1012 = vmatpush.xpose.msra.mxu0 0.0
  %1013 = vmatpush.xpose.msra.mxu0 0.0
  %1014 = vmatpush.xpose.msra.mxu0 0.0
  %1015 = vmatpush.xpose.msra.mxu0 0.0
  %1016 = vmatpush.xpose.msra.mxu0 0.0
  %1017 = vmatpush.xpose.msra.mxu0 0.0
  %1018 = vmatpush.xpose.msra.mxu0 0.0
  %1019 = vmatpush.xpose.msra.mxu0 0.0
  %1020 = vmatpush.xpose.msra.mxu0 0.0
  %1021 = vmatpush.xpose.msra.mxu0 0.0
  %1022 = vmatpush.xpose.msra.mxu0 0.0
  %1023 = vmatpush.xpose.msra.mxu0 %v1006
  %1024 = vmatmul.f32.gmra.mxu0 %v1004
  %v1025 = vpop.f32.mrf.mxu0
  %v1026 = vadd.f32 0.0, %v1025
  %1027 = vdwg.mxu0
  %v1029 = vsel %vm195, %v876, 0
  %v1031 = vsel %vm195, %v927, 0
  %1033 = vmatpush.xpose.msra.mxu0 0.0
  %1034 = vmatpush.xpose.msra.mxu0 0.0
  %1035 = vmatpush.xpose.msra.mxu0 0.0
  %1036 = vmatpush.xpose.msra.mxu0 0.0
  %1037 = vmatpush.xpose.msra.mxu0 0.0
  %1038 = vmatpush.xpose.msra.mxu0 0.0
  %1039 = vmatpush.xpose.msra.mxu0 0.0
  %1040 = vmatpush.xpose.msra.mxu0 0.0
  %1041 = vmatpush.xpose.msra.mxu0 0.0
  %1042 = vmatpush.xpose.msra.mxu0 0.0
  %1043 = vmatpush.xpose.msra.mxu0 0.0
  %1044 = vmatpush.xpose.msra.mxu0 0.0
  %1045 = vmatpush.xpose.msra.mxu0 0.0
  %1046 = vmatpush.xpose.msra.mxu0 0.0
  %1047 = vmatpush.xpose.msra.mxu0 0.0
  %1048 = vmatpush.xpose.msra.mxu0 %v1031
  %1049 = vmatmul.f32.gmra.mxu0 %v1029
  %v1050 = vpop.f32.mrf.mxu0
  %v1051 = vadd.f32 0.0, %v1050
  %1052 = vdwg.mxu0
  %v1054 = vsel %vm195, %v877, 0
  %v1056 = vsel %vm195, %v930, 0
  %1058 = vmatpush.xpose.msra.mxu0 0.0
  %1059 = vmatpush.xpose.msra.mxu0 0.0
  %1060 = vmatpush.xpose.msra.mxu0 0.0
  %1061 = vmatpush.xpose.msra.mxu0 0.0
  %1062 = vmatpush.xpose.msra.mxu0 0.0
  %1063 = vmatpush.xpose.msra.mxu0 0.0
  %1064 = vmatpush.xpose.msra.mxu0 0.0
  %1065 = vmatpush.xpose.msra.mxu0 0.0
  %1066 = vmatpush.xpose.msra.mxu0 0.0
  %1067 = vmatpush.xpose.msra.mxu0 0.0
  %1068 = vmatpush.xpose.msra.mxu0 0.0
  %1069 = vmatpush.xpose.msra.mxu0 0.0
  %1070 = vmatpush.xpose.msra.mxu0 0.0
  %1071 = vmatpush.xpose.msra.mxu0 0.0
  %1072 = vmatpush.xpose.msra.mxu0 0.0
  %1073 = vmatpush.xpose.msra.mxu0 %v1056
  %1074 = vmatmul.f32.gmra.mxu0 %v1054
  %v1075 = vpop.f32.mrf.mxu0
  %v1076 = vadd.f32 0.0, %v1075
  %1077 = vdwg.mxu0
  %v1079 = vsel %vm195, %v878, 0
  %v1081 = vsel %vm195, %v933, 0
  %1083 = vmatpush.xpose.msra.mxu0 0.0
  %1084 = vmatpush.xpose.msra.mxu0 0.0
  %1085 = vmatpush.xpose.msra.mxu0 0.0
  %1086 = vmatpush.xpose.msra.mxu0 0.0
  %1087 = vmatpush.xpose.msra.mxu0 0.0
  %1088 = vmatpush.xpose.msra.mxu0 0.0
  %1089 = vmatpush.xpose.msra.mxu0 0.0
  %1090 = vmatpush.xpose.msra.mxu0 0.0
  %1091 = vmatpush.xpose.msra.mxu0 0.0
  %1092 = vmatpush.xpose.msra.mxu0 0.0
  %1093 = vmatpush.xpose.msra.mxu0 0.0
  %1094 = vmatpush.xpose.msra.mxu0 0.0
  %1095 = vmatpush.xpose.msra.mxu0 0.0
  %1096 = vmatpush.xpose.msra.mxu0 0.0
  %1097 = vmatpush.xpose.msra.mxu0 0.0
  %1098 = vmatpush.xpose.msra.mxu0 %v1081
  %1099 = vmatmul.f32.gmra.mxu0 %v1079
  %v1100 = vpop.f32.mrf.mxu0
  %v1101 = vadd.f32 0.0, %v1100
  %1102 = vdwg.mxu0
  %v1104 = vsel %vm195, %v879, 0
  %v1106 = vsel %vm195, %v936, 0
  %1108 = vmatpush.xpose.msra.mxu0 0.0
  %1109 = vmatpush.xpose.msra.mxu0 0.0
  %1110 = vmatpush.xpose.msra.mxu0 0.0
  %1111 = vmatpush.xpose.msra.mxu0 0.0
  %1112 = vmatpush.xpose.msra.mxu0 0.0
  %1113 = vmatpush.xpose.msra.mxu0 0.0
  %1114 = vmatpush.xpose.msra.mxu0 0.0
  %1115 = vmatpush.xpose.msra.mxu0 0.0
  %1116 = vmatpush.xpose.msra.mxu0 0.0
  %1117 = vmatpush.xpose.msra.mxu0 0.0
  %1118 = vmatpush.xpose.msra.mxu0 0.0
  %1119 = vmatpush.xpose.msra.mxu0 0.0
  %1120 = vmatpush.xpose.msra.mxu0 0.0
  %1121 = vmatpush.xpose.msra.mxu0 0.0
  %1122 = vmatpush.xpose.msra.mxu0 0.0
  %1123 = vmatpush.xpose.msra.mxu0 %v1106
  %1124 = vmatmul.f32.gmra.mxu0 %v1104
  %v1125 = vpop.f32.mrf.mxu0
  %v1126 = vadd.f32 0.0, %v1125
  %1127 = vdwg.mxu0
  %v1129 = vsel %vm195, %v880, 0
  %v1131 = vsel %vm195, %v939, 0
  %1133 = vmatpush.xpose.msra.mxu0 0.0
  %1134 = vmatpush.xpose.msra.mxu0 0.0
  %1135 = vmatpush.xpose.msra.mxu0 0.0
  %1136 = vmatpush.xpose.msra.mxu0 0.0
  %1137 = vmatpush.xpose.msra.mxu0 0.0
  %1138 = vmatpush.xpose.msra.mxu0 0.0
  %1139 = vmatpush.xpose.msra.mxu0 0.0
  %1140 = vmatpush.xpose.msra.mxu0 0.0
  %1141 = vmatpush.xpose.msra.mxu0 0.0
  %1142 = vmatpush.xpose.msra.mxu0 0.0
  %1143 = vmatpush.xpose.msra.mxu0 0.0
  %1144 = vmatpush.xpose.msra.mxu0 0.0
  %1145 = vmatpush.xpose.msra.mxu0 0.0
  %1146 = vmatpush.xpose.msra.mxu0 0.0
  %1147 = vmatpush.xpose.msra.mxu0 0.0
  %1148 = vmatpush.xpose.msra.mxu0 %v1131
  %1149 = vmatmul.f32.gmra.mxu0 %v1129
  %v1150 = vpop.f32.mrf.mxu0
  %v1151 = vadd.f32 0.0, %v1150
  %1152 = vdwg.mxu0
  %v1154 = vsel %vm195, %v881, 0
  %v1156 = vsel %vm195, %v942, 0
  %1158 = vmatpush.xpose.msra.mxu0 0.0
  %1159 = vmatpush.xpose.msra.mxu0 0.0
  %1160 = vmatpush.xpose.msra.mxu0 0.0
  %1161 = vmatpush.xpose.msra.mxu0 0.0
  %1162 = vmatpush.xpose.msra.mxu0 0.0
  %1163 = vmatpush.xpose.msra.mxu0 0.0
  %1164 = vmatpush.xpose.msra.mxu0 0.0
  %1165 = vmatpush.xpose.msra.mxu0 0.0
  %1166 = vmatpush.xpose.msra.mxu0 0.0
  %1167 = vmatpush.xpose.msra.mxu0 0.0
  %1168 = vmatpush.xpose.msra.mxu0 0.0
  %1169 = vmatpush.xpose.msra.mxu0 0.0
  %1170 = vmatpush.xpose.msra.mxu0 0.0
  %1171 = vmatpush.xpose.msra.mxu0 0.0
  %1172 = vmatpush.xpose.msra.mxu0 0.0
  %1173 = vmatpush.xpose.msra.mxu0 %v1156
  %1174 = vmatmul.f32.gmra.mxu0 %v1154
  %v1175 = vpop.f32.mrf.mxu0
  %v1176 = vadd.f32 0.0, %v1175
  %1177 = vdwg.mxu0
  %v1179 = vsel %vm195, %v882, 0
  %v1181 = vsel %vm195, %v945, 0
  %1183 = vmatpush.xpose.msra.mxu0 0.0
  %1184 = vmatpush.xpose.msra.mxu0 0.0
  %1185 = vmatpush.xpose.msra.mxu0 0.0
  %1186 = vmatpush.xpose.msra.mxu0 0.0
  %1187 = vmatpush.xpose.msra.mxu0 0.0
  %1188 = vmatpush.xpose.msra.mxu0 0.0
  %1189 = vmatpush.xpose.msra.mxu0 0.0
  %1190 = vmatpush.xpose.msra.mxu0 0.0
  %1191 = vmatpush.xpose.msra.mxu0 0.0
  %1192 = vmatpush.xpose.msra.mxu0 0.0
  %1193 = vmatpush.xpose.msra.mxu0 0.0
  %1194 = vmatpush.xpose.msra.mxu0 0.0
  %1195 = vmatpush.xpose.msra.mxu0 0.0
  %1196 = vmatpush.xpose.msra.mxu0 0.0
  %1197 = vmatpush.xpose.msra.mxu0 0.0
  %1198 = vmatpush.xpose.msra.mxu0 %v1181
  %1199 = vmatmul.f32.gmra.mxu0 %v1179
  %v1200 = vpop.f32.mrf.mxu0
  %v1201 = vadd.f32 0.0, %v1200
  %1202 = vdwg.mxu0
  %v1203 = vperm.slane %v1026, 0
  %v1204 = vperm.slane %v1051, 0
  %v1205 = vperm.slane %v1076, 0
  %v1206 = vperm.slane %v1101, 0
  %v1207 = vperm.slane %v1126, 0
  %v1208 = vperm.slane %v1151, 0
  %v1209 = vperm.slane %v1176, 0
  %v1210 = vperm.slane %v1201, 0
  %v1211 = vadd.f32 %v981, %v1203
  %v1212 = vadd.f32 %v984, %v1204
  %v1213 = vadd.f32 %v987, %v1205
  %v1214 = vadd.f32 %v990, %v1206
  %v1215 = vadd.f32 %v993, %v1207
  %v1216 = vadd.f32 %v996, %v1208
  %v1217 = vadd.f32 %v999, %v1209
  %v1218 = vadd.f32 %v1002, %v1210
  %v1227 = vperm.slane %v891, 0
  %v1228 = vperm.slane %v892, 0
  %v1229 = vperm.slane %v893, 0
  %v1230 = vperm.slane %v894, 0
  %v1231 = vperm.slane %v895, 0
  %v1232 = vperm.slane %v896, 0
  %v1233 = vperm.slane %v897, 0
  %v1234 = vperm.slane %v898, 0
  %1235 = vset.pattern.permute.xlu0 0
  %1236 = vperm.xlu0 %1235, %v1227
  %v1237 = vpop.permute.xlu0 %1236
  %1239 = vset.pattern.permute.xlu0 0
  %1240 = vperm.xlu0 %1239, %v1228
  %v1241 = vpop.permute.xlu0 %1240
  %1243 = vset.pattern.permute.xlu0 0
  %1244 = vperm.xlu0 %1243, %v1229
  %v1245 = vpop.permute.xlu0 %1244
  %1247 = vset.pattern.permute.xlu0 0
  %1248 = vperm.xlu0 %1247, %v1230
  %v1249 = vpop.permute.xlu0 %1248
  %1251 = vset.pattern.permute.xlu0 0
  %1252 = vperm.xlu0 %1251, %v1231
  %v1253 = vpop.permute.xlu0 %1252
  %1255 = vset.pattern.permute.xlu0 0
  %1256 = vperm.xlu0 %1255, %v1232
  %v1257 = vpop.permute.xlu0 %1256
  %1259 = vset.pattern.permute.xlu0 0
  %1260 = vperm.xlu0 %1259, %v1233
  %v1261 = vpop.permute.xlu0 %1260
  %1263 = vset.pattern.permute.xlu0 0
  %1264 = vperm.xlu0 %1263, %v1234
  %v1265 = vpop.permute.xlu0 %1264
  %v1267 = vmul.f32 %v1237, %v900
  %v1268 = vmul.f32 %v1241, %v900
  %v1269 = vmul.f32 %v1245, %v900
  %v1270 = vmul.f32 %v1249, %v900
  %v1271 = vmul.f32 %v1253, %v900
  %v1272 = vmul.f32 %v1257, %v900
  %v1273 = vmul.f32 %v1261, %v900
  %v1274 = vmul.f32 %v1265, %v900
  %v1275 = vadd.f32 %v1211, %v1267
  %v1276 = vadd.f32 %v1212, %v1268
  %v1277 = vadd.f32 %v1213, %v1269
  %v1278 = vadd.f32 %v1214, %v1270
  %v1279 = vadd.f32 %v1215, %v1271
  %v1280 = vadd.f32 %v1216, %v1272
  %v1281 = vadd.f32 %v1217, %v1273
  %v1282 = vadd.f32 %v1218, %v1274
  %vm1283 = vcmp.ge.f32.partialorder %v1275, 0.0
  %vm1284 = vcmp.ge.f32.partialorder %v1276, 0.0
  %vm1285 = vcmp.ge.f32.partialorder %v1277, 0.0
  %vm1286 = vcmp.ge.f32.partialorder %v1278, 0.0
  %vm1287 = vcmp.ge.f32.partialorder %v1279, 0.0
  %vm1288 = vcmp.ge.f32.partialorder %v1280, 0.0
  %vm1289 = vcmp.ge.f32.partialorder %v1281, 0.0
  %vm1290 = vcmp.ge.f32.partialorder %v1282, 0.0
  %v1291 = vmul.f32 %v1275, 0.2
  %v1292 = vmul.f32 %v1276, 0.2
  %v1293 = vmul.f32 %v1277, 0.2
  %v1294 = vmul.f32 %v1278, 0.2
  %v1295 = vmul.f32 %v1279, 0.2
  %v1296 = vmul.f32 %v1280, 0.2
  %v1297 = vmul.f32 %v1281, 0.2
  %v1298 = vmul.f32 %v1282, 0.2
  %v1299 = vsel %vm1283, %v1275, %v1291
  %v1300 = vsel %vm1284, %v1276, %v1292
  %v1301 = vsel %vm1285, %v1277, %v1293
  %v1302 = vsel %vm1286, %v1278, %v1294
  %v1303 = vsel %vm1287, %v1279, %v1295
  %v1304 = vsel %vm1288, %v1280, %v1296
  %v1305 = vsel %vm1289, %v1281, %v1297
  %v1306 = vsel %vm1290, %v1282, %v1298
  %vm1307 = vcmp.gt.f32.partialorder %v899, 0.0
  %v1308 = vsel %vm1307, 1, 0
  %vm1309 = vcmp.eq.s32.totalorder %v1308, 1
  %v1310 = vsel %vm1309, %v1299, -1e+30
  %v1311 = vsel %vm1309, %v1300, -1e+30
  %v1312 = vsel %vm1309, %v1301, -1e+30
  %v1313 = vsel %vm1309, %v1302, -1e+30
  %v1314 = vsel %vm1309, %v1303, -1e+30
  %v1315 = vsel %vm1309, %v1304, -1e+30
  %v1316 = vsel %vm1309, %v1305, -1e+30
  %v1317 = vsel %vm1309, %v1306, -1e+30
  %v1318 = vsel %vm195, %v1310, -inf
  %1319 = vmax.xlane.f32.xlu0 %v1318
  %v1320 = vpop.xlane.xlu0 %1319
  %v1321 = vsel %vm195, %v1311, -inf
  %1322 = vmax.xlane.f32.xlu0 %v1321
  %v1323 = vpop.xlane.xlu0 %1322
  %v1324 = vsel %vm195, %v1312, -inf
  %1325 = vmax.xlane.f32.xlu0 %v1324
  %v1326 = vpop.xlane.xlu0 %1325
  %v1327 = vsel %vm195, %v1313, -inf
  %1328 = vmax.xlane.f32.xlu0 %v1327
  %v1329 = vpop.xlane.xlu0 %1328
  %v1330 = vsel %vm195, %v1314, -inf
  %1331 = vmax.xlane.f32.xlu0 %v1330
  %v1332 = vpop.xlane.xlu0 %1331
  %v1333 = vsel %vm195, %v1315, -inf
  %1334 = vmax.xlane.f32.xlu0 %v1333
  %v1335 = vpop.xlane.xlu0 %1334
  %v1336 = vsel %vm195, %v1316, -inf
  %1337 = vmax.xlane.f32.xlu0 %v1336
  %v1338 = vpop.xlane.xlu0 %1337
  %v1339 = vsel %vm195, %v1317, -inf
  %1340 = vmax.xlane.f32.xlu0 %v1339
  %v1341 = vpop.xlane.xlu0 %1340
  %v1342 = vsub.f32 %v1310, %v1320
  %v1343 = vsub.f32 %v1311, %v1323
  %v1344 = vsub.f32 %v1312, %v1326
  %v1345 = vsub.f32 %v1313, %v1329
  %v1346 = vsub.f32 %v1314, %v1332
  %v1347 = vsub.f32 %v1315, %v1335
  %v1348 = vsub.f32 %v1316, %v1338
  %v1349 = vsub.f32 %v1317, %v1341
  %v1350 = vmul.f32 %v1342, 1.442695
  %v1351 = vpow.pop %v1350
  %v1352 = vmul.f32 %v1343, 1.442695
  %v1353 = vpow.pop %v1352
  %v1354 = vmul.f32 %v1344, 1.442695
  %v1355 = vpow.pop %v1354
  %v1356 = vmul.f32 %v1345, 1.442695
  %v1357 = vpow.pop %v1356
  %v1358 = vmul.f32 %v1346, 1.442695
  %v1359 = vpow.pop %v1358
  %v1360 = vmul.f32 %v1347, 1.442695
  %v1361 = vpow.pop %v1360
  %v1362 = vmul.f32 %v1348, 1.442695
  %v1363 = vpow.pop %v1362
  %v1364 = vmul.f32 %v1349, 1.442695
  %v1365 = vpow.pop %v1364
  %v1366 = vsel %vm195, %v1351, 0.0
  %1367 = vadd.xlane.f32.xlu0 %v1366
  %v1368 = vpop.xlane.xlu0 %1367
  %v1369 = vsel %vm195, %v1353, 0.0
  %1370 = vadd.xlane.f32.xlu0 %v1369
  %v1371 = vpop.xlane.xlu0 %1370
  %v1372 = vsel %vm195, %v1355, 0.0
  %1373 = vadd.xlane.f32.xlu0 %v1372
  %v1374 = vpop.xlane.xlu0 %1373
  %v1375 = vsel %vm195, %v1357, 0.0
  %1376 = vadd.xlane.f32.xlu0 %v1375
  %v1377 = vpop.xlane.xlu0 %1376
  %v1378 = vsel %vm195, %v1359, 0.0
  %1379 = vadd.xlane.f32.xlu0 %v1378
  %v1380 = vpop.xlane.xlu0 %1379
  %v1381 = vsel %vm195, %v1361, 0.0
  %1382 = vadd.xlane.f32.xlu0 %v1381
  %v1383 = vpop.xlane.xlu0 %1382
  %v1384 = vsel %vm195, %v1363, 0.0
  %1385 = vadd.xlane.f32.xlu0 %v1384
  %v1386 = vpop.xlane.xlu0 %1385
  %v1387 = vsel %vm195, %v1365, 0.0
  %1388 = vadd.xlane.f32.xlu0 %v1387
  %v1389 = vpop.xlane.xlu0 %1388
  %v1390 = vrcp.pop %v1368
  %v1391 = vrcp.pop %v1371
  %v1392 = vrcp.pop %v1374
  %v1393 = vrcp.pop %v1377
  %v1394 = vrcp.pop %v1380
  %v1395 = vrcp.pop %v1383
  %v1396 = vrcp.pop %v1386
  %v1397 = vrcp.pop %v1389
  %v1398 = vmul.f32 %v1351, %v1390
  %v1399 = vmul.f32 %v1353, %v1391
  %v1400 = vmul.f32 %v1355, %v1392
  %v1401 = vmul.f32 %v1357, %v1393
  %v1402 = vmul.f32 %v1359, %v1394
  %v1403 = vmul.f32 %v1361, %v1395
  %v1404 = vmul.f32 %v1363, %v1396
  %v1405 = vmul.f32 %v1365, %v1397
  %v1407 = vsel %vm195, %v1398, 0
  %1409 = vmatpush.msra.mxu0 0.0
  %1410 = vmatpush.msra.mxu0 0.0
  %1411 = vmatpush.msra.mxu0 0.0
  %1412 = vmatpush.msra.mxu0 0.0
  %1413 = vmatpush.msra.mxu0 0.0
  %1414 = vmatpush.msra.mxu0 0.0
  %1415 = vmatpush.msra.mxu0 0.0
  %1416 = vmatpush.msra.mxu0 0.0
  %1417 = vmatpush.msra.mxu0 0.0
  %1418 = vmatpush.msra.mxu0 0.0
  %1419 = vmatpush.msra.mxu0 0.0
  %1420 = vmatpush.msra.mxu0 0.0
  %1421 = vmatpush.msra.mxu0 0.0
  %1422 = vmatpush.msra.mxu0 0.0
  %1423 = vmatpush.msra.mxu0 0.0
  %1424 = vmatpush.msra.mxu0 %v923
  %1425 = vmatmul.f32.gmra.mxu0 %v1407
  %v1426 = vpop.f32.mrf.mxu0
  %v1427 = vadd.f32 0.0, %v1426
  %1428 = vdwg.mxu0
  %v1430 = vsel %vm195, %v1399, 0
  %1432 = vmatpush.msra.mxu0 0.0
  %1433 = vmatpush.msra.mxu0 0.0
  %1434 = vmatpush.msra.mxu0 0.0
  %1435 = vmatpush.msra.mxu0 0.0
  %1436 = vmatpush.msra.mxu0 0.0
  %1437 = vmatpush.msra.mxu0 0.0
  %1438 = vmatpush.msra.mxu0 0.0
  %1439 = vmatpush.msra.mxu0 0.0
  %1440 = vmatpush.msra.mxu0 0.0
  %1441 = vmatpush.msra.mxu0 0.0
  %1442 = vmatpush.msra.mxu0 0.0
  %1443 = vmatpush.msra.mxu0 0.0
  %1444 = vmatpush.msra.mxu0 0.0
  %1445 = vmatpush.msra.mxu0 0.0
  %1446 = vmatpush.msra.mxu0 0.0
  %1447 = vmatpush.msra.mxu0 %v927
  %1448 = vmatmul.f32.gmra.mxu0 %v1430
  %v1449 = vpop.f32.mrf.mxu0
  %v1450 = vadd.f32 0.0, %v1449
  %1451 = vdwg.mxu0
  %v1453 = vsel %vm195, %v1400, 0
  %1455 = vmatpush.msra.mxu0 0.0
  %1456 = vmatpush.msra.mxu0 0.0
  %1457 = vmatpush.msra.mxu0 0.0
  %1458 = vmatpush.msra.mxu0 0.0
  %1459 = vmatpush.msra.mxu0 0.0
  %1460 = vmatpush.msra.mxu0 0.0
  %1461 = vmatpush.msra.mxu0 0.0
  %1462 = vmatpush.msra.mxu0 0.0
  %1463 = vmatpush.msra.mxu0 0.0
  %1464 = vmatpush.msra.mxu0 0.0
  %1465 = vmatpush.msra.mxu0 0.0
  %1466 = vmatpush.msra.mxu0 0.0
  %1467 = vmatpush.msra.mxu0 0.0
  %1468 = vmatpush.msra.mxu0 0.0
  %1469 = vmatpush.msra.mxu0 0.0
  %1470 = vmatpush.msra.mxu0 %v930
  %1471 = vmatmul.f32.gmra.mxu0 %v1453
  %v1472 = vpop.f32.mrf.mxu0
  %v1473 = vadd.f32 0.0, %v1472
  %1474 = vdwg.mxu0
  %v1476 = vsel %vm195, %v1401, 0
  %1478 = vmatpush.msra.mxu0 0.0
  %1479 = vmatpush.msra.mxu0 0.0
  %1480 = vmatpush.msra.mxu0 0.0
  %1481 = vmatpush.msra.mxu0 0.0
  %1482 = vmatpush.msra.mxu0 0.0
  %1483 = vmatpush.msra.mxu0 0.0
  %1484 = vmatpush.msra.mxu0 0.0
  %1485 = vmatpush.msra.mxu0 0.0
  %1486 = vmatpush.msra.mxu0 0.0
  %1487 = vmatpush.msra.mxu0 0.0
  %1488 = vmatpush.msra.mxu0 0.0
  %1489 = vmatpush.msra.mxu0 0.0
  %1490 = vmatpush.msra.mxu0 0.0
  %1491 = vmatpush.msra.mxu0 0.0
  %1492 = vmatpush.msra.mxu0 0.0
  %1493 = vmatpush.msra.mxu0 %v933
  %1494 = vmatmul.f32.gmra.mxu0 %v1476
  %v1495 = vpop.f32.mrf.mxu0
  %v1496 = vadd.f32 0.0, %v1495
  %1497 = vdwg.mxu0
  %v1499 = vsel %vm195, %v1402, 0
  %1501 = vmatpush.msra.mxu0 0.0
  %1502 = vmatpush.msra.mxu0 0.0
  %1503 = vmatpush.msra.mxu0 0.0
  %1504 = vmatpush.msra.mxu0 0.0
  %1505 = vmatpush.msra.mxu0 0.0
  %1506 = vmatpush.msra.mxu0 0.0
  %1507 = vmatpush.msra.mxu0 0.0
  %1508 = vmatpush.msra.mxu0 0.0
  %1509 = vmatpush.msra.mxu0 0.0
  %1510 = vmatpush.msra.mxu0 0.0
  %1511 = vmatpush.msra.mxu0 0.0
  %1512 = vmatpush.msra.mxu0 0.0
  %1513 = vmatpush.msra.mxu0 0.0
  %1514 = vmatpush.msra.mxu0 0.0
  %1515 = vmatpush.msra.mxu0 0.0
  %1516 = vmatpush.msra.mxu0 %v936
  %1517 = vmatmul.f32.gmra.mxu0 %v1499
  %v1518 = vpop.f32.mrf.mxu0
  %v1519 = vadd.f32 0.0, %v1518
  %1520 = vdwg.mxu0
  %v1522 = vsel %vm195, %v1403, 0
  %1524 = vmatpush.msra.mxu0 0.0
  %1525 = vmatpush.msra.mxu0 0.0
  %1526 = vmatpush.msra.mxu0 0.0
  %1527 = vmatpush.msra.mxu0 0.0
  %1528 = vmatpush.msra.mxu0 0.0
  %1529 = vmatpush.msra.mxu0 0.0
  %1530 = vmatpush.msra.mxu0 0.0
  %1531 = vmatpush.msra.mxu0 0.0
  %1532 = vmatpush.msra.mxu0 0.0
  %1533 = vmatpush.msra.mxu0 0.0
  %1534 = vmatpush.msra.mxu0 0.0
  %1535 = vmatpush.msra.mxu0 0.0
  %1536 = vmatpush.msra.mxu0 0.0
  %1537 = vmatpush.msra.mxu0 0.0
  %1538 = vmatpush.msra.mxu0 0.0
  %1539 = vmatpush.msra.mxu0 %v939
  %1540 = vmatmul.f32.gmra.mxu0 %v1522
  %v1541 = vpop.f32.mrf.mxu0
  %v1542 = vadd.f32 0.0, %v1541
  %1543 = vdwg.mxu0
  %v1545 = vsel %vm195, %v1404, 0
  %1547 = vmatpush.msra.mxu0 0.0
  %1548 = vmatpush.msra.mxu0 0.0
  %1549 = vmatpush.msra.mxu0 0.0
  %1550 = vmatpush.msra.mxu0 0.0
  %1551 = vmatpush.msra.mxu0 0.0
  %1552 = vmatpush.msra.mxu0 0.0
  %1553 = vmatpush.msra.mxu0 0.0
  %1554 = vmatpush.msra.mxu0 0.0
  %1555 = vmatpush.msra.mxu0 0.0
  %1556 = vmatpush.msra.mxu0 0.0
  %1557 = vmatpush.msra.mxu0 0.0
  %1558 = vmatpush.msra.mxu0 0.0
  %1559 = vmatpush.msra.mxu0 0.0
  %1560 = vmatpush.msra.mxu0 0.0
  %1561 = vmatpush.msra.mxu0 0.0
  %1562 = vmatpush.msra.mxu0 %v942
  %1563 = vmatmul.f32.gmra.mxu0 %v1545
  %v1564 = vpop.f32.mrf.mxu0
  %v1565 = vadd.f32 0.0, %v1564
  %1566 = vdwg.mxu0
  %v1568 = vsel %vm195, %v1405, 0
  %1570 = vmatpush.msra.mxu0 0.0
  %1571 = vmatpush.msra.mxu0 0.0
  %1572 = vmatpush.msra.mxu0 0.0
  %1573 = vmatpush.msra.mxu0 0.0
  %1574 = vmatpush.msra.mxu0 0.0
  %1575 = vmatpush.msra.mxu0 0.0
  %1576 = vmatpush.msra.mxu0 0.0
  %1577 = vmatpush.msra.mxu0 0.0
  %1578 = vmatpush.msra.mxu0 0.0
  %1579 = vmatpush.msra.mxu0 0.0
  %1580 = vmatpush.msra.mxu0 0.0
  %1581 = vmatpush.msra.mxu0 0.0
  %1582 = vmatpush.msra.mxu0 0.0
  %1583 = vmatpush.msra.mxu0 0.0
  %1584 = vmatpush.msra.mxu0 0.0
  %1585 = vmatpush.msra.mxu0 %v945
  %1586 = vmatmul.f32.gmra.mxu0 %v1568
  %v1587 = vpop.f32.mrf.mxu0
  %v1588 = vadd.f32 0.0, %v1587
  %1589 = vdwg.mxu0
  %1591 = vrot.lane.b32.xlu0 %v1450, 8
  %v1592 = vpop.permute.xlu0 %1591
  %1595 = vrot.lane.b32.xlu0 %v1473, 16
  %v1596 = vpop.permute.xlu0 %1595
  %1599 = vrot.lane.b32.xlu0 %v1496, 24
  %v1600 = vpop.permute.xlu0 %1599
  %1603 = vrot.lane.b32.xlu0 %v1519, 32
  %v1604 = vpop.permute.xlu0 %1603
  %1607 = vrot.lane.b32.xlu0 %v1542, 40
  %v1608 = vpop.permute.xlu0 %1607
  %1611 = vrot.lane.b32.xlu0 %v1565, 48
  %v1612 = vpop.permute.xlu0 %1611
  %1615 = vrot.lane.b32.xlu0 %v1588, 56
  %v1616 = vpop.permute.xlu0 %1615
  %v1618 = vsel %vm195, %v1427, %v1592
  %v1619 = vsel %vm849, %v1618, %v1596
  %v1620 = vsel %vm851, %v1619, %v1600
  %v1621 = vsel %vm853, %v1620, %v1604
  %v1622 = vsel %vm855, %v1621, %v1608
  %v1623 = vsel %vm857, %v1622, %v1612
  %v1624 = vsel %vm859, %v1623, %v1616
  %v1626 = vperm.slane %v874, 0
  %v1628 = vadd.f32 %v1624, %v1626
  %v1629 = vmax.f32 %v1628, 0.0
  %v1630 = vld [vmem:[%s11] sm:$0xff]
  %v1631 = vld [vmem:[%s11 + $0x8] sm:$0xff]
  %v1632 = vld [vmem:[%s11 + $0x10] sm:$0xff]
  %v1633 = vld [vmem:[%s11 + $0x18] sm:$0xff]
  %v1634 = vld [vmem:[%s11 + $0x20] sm:$0xff]
  %v1635 = vld [vmem:[%s11 + $0x28] sm:$0xff]
  %v1636 = vld [vmem:[%s11 + $0x30] sm:$0xff]
  %v1637 = vld [vmem:[%s11 + $0x38] sm:$0xff]
  %v1638 = vld [vmem:[%s12] sm:$0x1]
  %v1639 = vld [vmem:[%s13] sm:$0x1]
  %v1640 = vld [vmem:[%s13 + $0x1] sm:$0x1]
  %v1641 = vld [vmem:[%s13 + $0x2] sm:$0x1]
  %v1642 = vld [vmem:[%s13 + $0x3] sm:$0x1]
  %v1643 = vld [vmem:[%s13 + $0x4] sm:$0x1]
  %v1644 = vld [vmem:[%s13 + $0x5] sm:$0x1]
  %v1645 = vld [vmem:[%s13 + $0x6] sm:$0x1]
  %v1646 = vld [vmem:[%s13 + $0x7] sm:$0x1]
  %v1647 = vld [vmem:[%s14] sm:$0x1]
  %v1648 = vld [vmem:[%s14 + $0x1] sm:$0x1]
  %v1649 = vld [vmem:[%s14 + $0x2] sm:$0x1]
  %v1650 = vld [vmem:[%s14 + $0x3] sm:$0x1]
  %v1651 = vld [vmem:[%s14 + $0x4] sm:$0x1]
  %v1652 = vld [vmem:[%s14 + $0x5] sm:$0x1]
  %v1653 = vld [vmem:[%s14 + $0x6] sm:$0x1]
  %v1654 = vld [vmem:[%s14 + $0x7] sm:$0x1]
  %v1655 = vld [vmem:[%s15] sm:$0x1]
  %v1656 = vld [vmem:[%s15 + $0x1] sm:$0x1]
  %v1657 = vld [vmem:[%s15 + $0x2] sm:$0x1]
  %v1658 = vld [vmem:[%s15 + $0x3] sm:$0x1]
  %v1659 = vld [vmem:[%s15 + $0x4] sm:$0x1]
  %v1660 = vld [vmem:[%s15 + $0x5] sm:$0x1]
  %v1661 = vld [vmem:[%s15 + $0x6] sm:$0x1]
  %v1662 = vld [vmem:[%s15 + $0x7] sm:$0x1]
  %v1663 = vld [vmem:[%s19] sm:$0xff]
  %v1664 = vld [vmem:[%s20] sm:$0xff]
  %v1666 = vsel %vm901, %v1629, 0
  %1668 = vmatpush.msra.mxu0 0.0
  %1669 = vmatpush.msra.mxu0 0.0
  %1670 = vmatpush.msra.mxu0 0.0
  %1671 = vmatpush.msra.mxu0 0.0
  %1672 = vmatpush.msra.mxu0 0.0
  %1673 = vmatpush.msra.mxu0 0.0
  %1674 = vmatpush.msra.mxu0 0.0
  %1675 = vmatpush.msra.mxu0 0.0
  %1676 = vmatpush.msra.mxu0 %v1637
  %1677 = vmatpush.msra.mxu0 %v1636
  %1678 = vmatpush.msra.mxu0 %v1635
  %1679 = vmatpush.msra.mxu0 %v1634
  %1680 = vmatpush.msra.mxu0 %v1633
  %1681 = vmatpush.msra.mxu0 %v1632
  %1682 = vmatpush.msra.mxu0 %v1631
  %1683 = vmatpush.msra.mxu0 %v1630
  %1684 = vmatmul.f32.gmra.mxu0 %v1666
  %v1685 = vpop.f32.mrf.mxu0
  %v1686 = vadd.f32 0.0, %v1685
  %1687 = vdwg.mxu0
  %1689 = vrot.lane.b32.xlu0 %v1686, 120
  %v1690 = vpop.permute.xlu0 %1689
  %1692 = vrot.lane.b32.xlu0 %v1686, 112
  %v1693 = vpop.permute.xlu0 %1692
  %1695 = vrot.lane.b32.xlu0 %v1686, 104
  %v1696 = vpop.permute.xlu0 %1695
  %1698 = vrot.lane.b32.xlu0 %v1686, 96
  %v1699 = vpop.permute.xlu0 %1698
  %1701 = vrot.lane.b32.xlu0 %v1686, 88
  %v1702 = vpop.permute.xlu0 %1701
  %1704 = vrot.lane.b32.xlu0 %v1686, 80
  %v1705 = vpop.permute.xlu0 %1704
  %1707 = vrot.lane.b32.xlu0 %v1686, 72
  %v1708 = vpop.permute.xlu0 %1707
  %v1718 = vperm.slane %v1647, 0
  %v1719 = vperm.slane %v1648, 0
  %v1720 = vperm.slane %v1649, 0
  %v1721 = vperm.slane %v1650, 0
  %v1722 = vperm.slane %v1651, 0
  %v1723 = vperm.slane %v1652, 0
  %v1724 = vperm.slane %v1653, 0
  %v1725 = vperm.slane %v1654, 0
  %v1734 = vmul.f32 %v1686, %v1718
  %v1735 = vmul.f32 %v1690, %v1719
  %v1736 = vmul.f32 %v1693, %v1720
  %v1737 = vmul.f32 %v1696, %v1721
  %v1738 = vmul.f32 %v1699, %v1722
  %v1739 = vmul.f32 %v1702, %v1723
  %v1740 = vmul.f32 %v1705, %v1724
  %v1741 = vmul.f32 %v1708, %v1725
  %v1742 = vsel %vm195, %v1734, 0.0
  %1743 = vadd.xlane.f32.xlu0 %v1742
  %v1744 = vpop.xlane.xlu0 %1743
  %v1745 = vsel %vm195, %v1735, 0.0
  %1746 = vadd.xlane.f32.xlu0 %v1745
  %v1747 = vpop.xlane.xlu0 %1746
  %v1748 = vsel %vm195, %v1736, 0.0
  %1749 = vadd.xlane.f32.xlu0 %v1748
  %v1750 = vpop.xlane.xlu0 %1749
  %v1751 = vsel %vm195, %v1737, 0.0
  %1752 = vadd.xlane.f32.xlu0 %v1751
  %v1753 = vpop.xlane.xlu0 %1752
  %v1754 = vsel %vm195, %v1738, 0.0
  %1755 = vadd.xlane.f32.xlu0 %v1754
  %v1756 = vpop.xlane.xlu0 %1755
  %v1757 = vsel %vm195, %v1739, 0.0
  %1758 = vadd.xlane.f32.xlu0 %v1757
  %v1759 = vpop.xlane.xlu0 %1758
  %v1760 = vsel %vm195, %v1740, 0.0
  %1761 = vadd.xlane.f32.xlu0 %v1760
  %v1762 = vpop.xlane.xlu0 %1761
  %v1763 = vsel %vm195, %v1741, 0.0
  %1764 = vadd.xlane.f32.xlu0 %v1763
  %v1765 = vpop.xlane.xlu0 %1764
  %v1767 = vsel %vm195, %v1639, 0
  %v1769 = vsel %vm195, %v1686, 0
  %1771 = vmatpush.xpose.msra.mxu0 0.0
  %1772 = vmatpush.xpose.msra.mxu0 0.0
  %1773 = vmatpush.xpose.msra.mxu0 0.0
  %1774 = vmatpush.xpose.msra.mxu0 0.0
  %1775 = vmatpush.xpose.msra.mxu0 0.0
  %1776 = vmatpush.xpose.msra.mxu0 0.0
  %1777 = vmatpush.xpose.msra.mxu0 0.0
  %1778 = vmatpush.xpose.msra.mxu0 0.0
  %1779 = vmatpush.xpose.msra.mxu0 0.0
  %1780 = vmatpush.xpose.msra.mxu0 0.0
  %1781 = vmatpush.xpose.msra.mxu0 0.0
  %1782 = vmatpush.xpose.msra.mxu0 0.0
  %1783 = vmatpush.xpose.msra.mxu0 0.0
  %1784 = vmatpush.xpose.msra.mxu0 0.0
  %1785 = vmatpush.xpose.msra.mxu0 0.0
  %1786 = vmatpush.xpose.msra.mxu0 %v1769
  %1787 = vmatmul.f32.gmra.mxu0 %v1767
  %v1788 = vpop.f32.mrf.mxu0
  %v1789 = vadd.f32 0.0, %v1788
  %1790 = vdwg.mxu0
  %v1792 = vsel %vm195, %v1640, 0
  %v1794 = vsel %vm195, %v1690, 0
  %1796 = vmatpush.xpose.msra.mxu0 0.0
  %1797 = vmatpush.xpose.msra.mxu0 0.0
  %1798 = vmatpush.xpose.msra.mxu0 0.0
  %1799 = vmatpush.xpose.msra.mxu0 0.0
  %1800 = vmatpush.xpose.msra.mxu0 0.0
  %1801 = vmatpush.xpose.msra.mxu0 0.0
  %1802 = vmatpush.xpose.msra.mxu0 0.0
  %1803 = vmatpush.xpose.msra.mxu0 0.0
  %1804 = vmatpush.xpose.msra.mxu0 0.0
  %1805 = vmatpush.xpose.msra.mxu0 0.0
  %1806 = vmatpush.xpose.msra.mxu0 0.0
  %1807 = vmatpush.xpose.msra.mxu0 0.0
  %1808 = vmatpush.xpose.msra.mxu0 0.0
  %1809 = vmatpush.xpose.msra.mxu0 0.0
  %1810 = vmatpush.xpose.msra.mxu0 0.0
  %1811 = vmatpush.xpose.msra.mxu0 %v1794
  %1812 = vmatmul.f32.gmra.mxu0 %v1792
  %v1813 = vpop.f32.mrf.mxu0
  %v1814 = vadd.f32 0.0, %v1813
  %1815 = vdwg.mxu0
  %v1817 = vsel %vm195, %v1641, 0
  %v1819 = vsel %vm195, %v1693, 0
  %1821 = vmatpush.xpose.msra.mxu0 0.0
  %1822 = vmatpush.xpose.msra.mxu0 0.0
  %1823 = vmatpush.xpose.msra.mxu0 0.0
  %1824 = vmatpush.xpose.msra.mxu0 0.0
  %1825 = vmatpush.xpose.msra.mxu0 0.0
  %1826 = vmatpush.xpose.msra.mxu0 0.0
  %1827 = vmatpush.xpose.msra.mxu0 0.0
  %1828 = vmatpush.xpose.msra.mxu0 0.0
  %1829 = vmatpush.xpose.msra.mxu0 0.0
  %1830 = vmatpush.xpose.msra.mxu0 0.0
  %1831 = vmatpush.xpose.msra.mxu0 0.0
  %1832 = vmatpush.xpose.msra.mxu0 0.0
  %1833 = vmatpush.xpose.msra.mxu0 0.0
  %1834 = vmatpush.xpose.msra.mxu0 0.0
  %1835 = vmatpush.xpose.msra.mxu0 0.0
  %1836 = vmatpush.xpose.msra.mxu0 %v1819
  %1837 = vmatmul.f32.gmra.mxu0 %v1817
  %v1838 = vpop.f32.mrf.mxu0
  %v1839 = vadd.f32 0.0, %v1838
  %1840 = vdwg.mxu0
  %v1842 = vsel %vm195, %v1642, 0
  %v1844 = vsel %vm195, %v1696, 0
  %1846 = vmatpush.xpose.msra.mxu0 0.0
  %1847 = vmatpush.xpose.msra.mxu0 0.0
  %1848 = vmatpush.xpose.msra.mxu0 0.0
  %1849 = vmatpush.xpose.msra.mxu0 0.0
  %1850 = vmatpush.xpose.msra.mxu0 0.0
  %1851 = vmatpush.xpose.msra.mxu0 0.0
  %1852 = vmatpush.xpose.msra.mxu0 0.0
  %1853 = vmatpush.xpose.msra.mxu0 0.0
  %1854 = vmatpush.xpose.msra.mxu0 0.0
  %1855 = vmatpush.xpose.msra.mxu0 0.0
  %1856 = vmatpush.xpose.msra.mxu0 0.0
  %1857 = vmatpush.xpose.msra.mxu0 0.0
  %1858 = vmatpush.xpose.msra.mxu0 0.0
  %1859 = vmatpush.xpose.msra.mxu0 0.0
  %1860 = vmatpush.xpose.msra.mxu0 0.0
  %1861 = vmatpush.xpose.msra.mxu0 %v1844
  %1862 = vmatmul.f32.gmra.mxu0 %v1842
  %v1863 = vpop.f32.mrf.mxu0
  %v1864 = vadd.f32 0.0, %v1863
  %1865 = vdwg.mxu0
  %v1867 = vsel %vm195, %v1643, 0
  %v1869 = vsel %vm195, %v1699, 0
  %1871 = vmatpush.xpose.msra.mxu0 0.0
  %1872 = vmatpush.xpose.msra.mxu0 0.0
  %1873 = vmatpush.xpose.msra.mxu0 0.0
  %1874 = vmatpush.xpose.msra.mxu0 0.0
  %1875 = vmatpush.xpose.msra.mxu0 0.0
  %1876 = vmatpush.xpose.msra.mxu0 0.0
  %1877 = vmatpush.xpose.msra.mxu0 0.0
  %1878 = vmatpush.xpose.msra.mxu0 0.0
  %1879 = vmatpush.xpose.msra.mxu0 0.0
  %1880 = vmatpush.xpose.msra.mxu0 0.0
  %1881 = vmatpush.xpose.msra.mxu0 0.0
  %1882 = vmatpush.xpose.msra.mxu0 0.0
  %1883 = vmatpush.xpose.msra.mxu0 0.0
  %1884 = vmatpush.xpose.msra.mxu0 0.0
  %1885 = vmatpush.xpose.msra.mxu0 0.0
  %1886 = vmatpush.xpose.msra.mxu0 %v1869
  %1887 = vmatmul.f32.gmra.mxu0 %v1867
  %v1888 = vpop.f32.mrf.mxu0
  %v1889 = vadd.f32 0.0, %v1888
  %1890 = vdwg.mxu0
  %v1892 = vsel %vm195, %v1644, 0
  %v1894 = vsel %vm195, %v1702, 0
  %1896 = vmatpush.xpose.msra.mxu0 0.0
  %1897 = vmatpush.xpose.msra.mxu0 0.0
  %1898 = vmatpush.xpose.msra.mxu0 0.0
  %1899 = vmatpush.xpose.msra.mxu0 0.0
  %1900 = vmatpush.xpose.msra.mxu0 0.0
  %1901 = vmatpush.xpose.msra.mxu0 0.0
  %1902 = vmatpush.xpose.msra.mxu0 0.0
  %1903 = vmatpush.xpose.msra.mxu0 0.0
  %1904 = vmatpush.xpose.msra.mxu0 0.0
  %1905 = vmatpush.xpose.msra.mxu0 0.0
  %1906 = vmatpush.xpose.msra.mxu0 0.0
  %1907 = vmatpush.xpose.msra.mxu0 0.0
  %1908 = vmatpush.xpose.msra.mxu0 0.0
  %1909 = vmatpush.xpose.msra.mxu0 0.0
  %1910 = vmatpush.xpose.msra.mxu0 0.0
  %1911 = vmatpush.xpose.msra.mxu0 %v1894
  %1912 = vmatmul.f32.gmra.mxu0 %v1892
  %v1913 = vpop.f32.mrf.mxu0
  %v1914 = vadd.f32 0.0, %v1913
  %1915 = vdwg.mxu0
  %v1917 = vsel %vm195, %v1645, 0
  %v1919 = vsel %vm195, %v1705, 0
  %1921 = vmatpush.xpose.msra.mxu0 0.0
  %1922 = vmatpush.xpose.msra.mxu0 0.0
  %1923 = vmatpush.xpose.msra.mxu0 0.0
  %1924 = vmatpush.xpose.msra.mxu0 0.0
  %1925 = vmatpush.xpose.msra.mxu0 0.0
  %1926 = vmatpush.xpose.msra.mxu0 0.0
  %1927 = vmatpush.xpose.msra.mxu0 0.0
  %1928 = vmatpush.xpose.msra.mxu0 0.0
  %1929 = vmatpush.xpose.msra.mxu0 0.0
  %1930 = vmatpush.xpose.msra.mxu0 0.0
  %1931 = vmatpush.xpose.msra.mxu0 0.0
  %1932 = vmatpush.xpose.msra.mxu0 0.0
  %1933 = vmatpush.xpose.msra.mxu0 0.0
  %1934 = vmatpush.xpose.msra.mxu0 0.0
  %1935 = vmatpush.xpose.msra.mxu0 0.0
  %1936 = vmatpush.xpose.msra.mxu0 %v1919
  %1937 = vmatmul.f32.gmra.mxu0 %v1917
  %v1938 = vpop.f32.mrf.mxu0
  %v1939 = vadd.f32 0.0, %v1938
  %1940 = vdwg.mxu0
  %v1942 = vsel %vm195, %v1646, 0
  %v1944 = vsel %vm195, %v1708, 0
  %1946 = vmatpush.xpose.msra.mxu0 0.0
  %1947 = vmatpush.xpose.msra.mxu0 0.0
  %1948 = vmatpush.xpose.msra.mxu0 0.0
  %1949 = vmatpush.xpose.msra.mxu0 0.0
  %1950 = vmatpush.xpose.msra.mxu0 0.0
  %1951 = vmatpush.xpose.msra.mxu0 0.0
  %1952 = vmatpush.xpose.msra.mxu0 0.0
  %1953 = vmatpush.xpose.msra.mxu0 0.0
  %1954 = vmatpush.xpose.msra.mxu0 0.0
  %1955 = vmatpush.xpose.msra.mxu0 0.0
  %1956 = vmatpush.xpose.msra.mxu0 0.0
  %1957 = vmatpush.xpose.msra.mxu0 0.0
  %1958 = vmatpush.xpose.msra.mxu0 0.0
  %1959 = vmatpush.xpose.msra.mxu0 0.0
  %1960 = vmatpush.xpose.msra.mxu0 0.0
  %1961 = vmatpush.xpose.msra.mxu0 %v1944
  %1962 = vmatmul.f32.gmra.mxu0 %v1942
  %v1963 = vpop.f32.mrf.mxu0
  %v1964 = vadd.f32 0.0, %v1963
  %1965 = vdwg.mxu0
  %v1966 = vperm.slane %v1789, 0
  %v1967 = vperm.slane %v1814, 0
  %v1968 = vperm.slane %v1839, 0
  %v1969 = vperm.slane %v1864, 0
  %v1970 = vperm.slane %v1889, 0
  %v1971 = vperm.slane %v1914, 0
  %v1972 = vperm.slane %v1939, 0
  %v1973 = vperm.slane %v1964, 0
  %v1974 = vadd.f32 %v1744, %v1966
  %v1975 = vadd.f32 %v1747, %v1967
  %v1976 = vadd.f32 %v1750, %v1968
  %v1977 = vadd.f32 %v1753, %v1969
  %v1978 = vadd.f32 %v1756, %v1970
  %v1979 = vadd.f32 %v1759, %v1971
  %v1980 = vadd.f32 %v1762, %v1972
  %v1981 = vadd.f32 %v1765, %v1973
  %v1990 = vperm.slane %v1655, 0
  %v1991 = vperm.slane %v1656, 0
  %v1992 = vperm.slane %v1657, 0
  %v1993 = vperm.slane %v1658, 0
  %v1994 = vperm.slane %v1659, 0
  %v1995 = vperm.slane %v1660, 0
  %v1996 = vperm.slane %v1661, 0
  %v1997 = vperm.slane %v1662, 0
  %1998 = vset.pattern.permute.xlu0 0
  %1999 = vperm.xlu0 %1998, %v1990
  %v2000 = vpop.permute.xlu0 %1999
  %2002 = vset.pattern.permute.xlu0 0
  %2003 = vperm.xlu0 %2002, %v1991
  %v2004 = vpop.permute.xlu0 %2003
  %2006 = vset.pattern.permute.xlu0 0
  %2007 = vperm.xlu0 %2006, %v1992
  %v2008 = vpop.permute.xlu0 %2007
  %2010 = vset.pattern.permute.xlu0 0
  %2011 = vperm.xlu0 %2010, %v1993
  %v2012 = vpop.permute.xlu0 %2011
  %2014 = vset.pattern.permute.xlu0 0
  %2015 = vperm.xlu0 %2014, %v1994
  %v2016 = vpop.permute.xlu0 %2015
  %2018 = vset.pattern.permute.xlu0 0
  %2019 = vperm.xlu0 %2018, %v1995
  %v2020 = vpop.permute.xlu0 %2019
  %2022 = vset.pattern.permute.xlu0 0
  %2023 = vperm.xlu0 %2022, %v1996
  %v2024 = vpop.permute.xlu0 %2023
  %2026 = vset.pattern.permute.xlu0 0
  %2027 = vperm.xlu0 %2026, %v1997
  %v2028 = vpop.permute.xlu0 %2027
  %v2030 = vmul.f32 %v2000, %v1664
  %v2031 = vmul.f32 %v2004, %v1664
  %v2032 = vmul.f32 %v2008, %v1664
  %v2033 = vmul.f32 %v2012, %v1664
  %v2034 = vmul.f32 %v2016, %v1664
  %v2035 = vmul.f32 %v2020, %v1664
  %v2036 = vmul.f32 %v2024, %v1664
  %v2037 = vmul.f32 %v2028, %v1664
  %v2038 = vadd.f32 %v1974, %v2030
  %v2039 = vadd.f32 %v1975, %v2031
  %v2040 = vadd.f32 %v1976, %v2032
  %v2041 = vadd.f32 %v1977, %v2033
  %v2042 = vadd.f32 %v1978, %v2034
  %v2043 = vadd.f32 %v1979, %v2035
  %v2044 = vadd.f32 %v1980, %v2036
  %v2045 = vadd.f32 %v1981, %v2037
  %vm2046 = vcmp.ge.f32.partialorder %v2038, 0.0
  %vm2047 = vcmp.ge.f32.partialorder %v2039, 0.0
  %vm2048 = vcmp.ge.f32.partialorder %v2040, 0.0
  %vm2049 = vcmp.ge.f32.partialorder %v2041, 0.0
  %vm2050 = vcmp.ge.f32.partialorder %v2042, 0.0
  %vm2051 = vcmp.ge.f32.partialorder %v2043, 0.0
  %vm2052 = vcmp.ge.f32.partialorder %v2044, 0.0
  %vm2053 = vcmp.ge.f32.partialorder %v2045, 0.0
  %v2054 = vmul.f32 %v2038, 0.2
  %v2055 = vmul.f32 %v2039, 0.2
  %v2056 = vmul.f32 %v2040, 0.2
  %v2057 = vmul.f32 %v2041, 0.2
  %v2058 = vmul.f32 %v2042, 0.2
  %v2059 = vmul.f32 %v2043, 0.2
  %v2060 = vmul.f32 %v2044, 0.2
  %v2061 = vmul.f32 %v2045, 0.2
  %v2062 = vsel %vm2046, %v2038, %v2054
  %v2063 = vsel %vm2047, %v2039, %v2055
  %v2064 = vsel %vm2048, %v2040, %v2056
  %v2065 = vsel %vm2049, %v2041, %v2057
  %v2066 = vsel %vm2050, %v2042, %v2058
  %v2067 = vsel %vm2051, %v2043, %v2059
  %v2068 = vsel %vm2052, %v2044, %v2060
  %v2069 = vsel %vm2053, %v2045, %v2061
  %vm2070 = vcmp.gt.f32.partialorder %v1663, 0.0
  %v2071 = vsel %vm2070, 1, 0
  %vm2072 = vcmp.eq.s32.totalorder %v2071, 1
  %v2073 = vsel %vm2072, %v2062, -1e+30
  %v2074 = vsel %vm2072, %v2063, -1e+30
  %v2075 = vsel %vm2072, %v2064, -1e+30
  %v2076 = vsel %vm2072, %v2065, -1e+30
  %v2077 = vsel %vm2072, %v2066, -1e+30
  %v2078 = vsel %vm2072, %v2067, -1e+30
  %v2079 = vsel %vm2072, %v2068, -1e+30
  %v2080 = vsel %vm2072, %v2069, -1e+30
  %v2081 = vsel %vm195, %v2073, -inf
  %2082 = vmax.xlane.f32.xlu0 %v2081
  %v2083 = vpop.xlane.xlu0 %2082
  %v2084 = vsel %vm195, %v2074, -inf
  %2085 = vmax.xlane.f32.xlu0 %v2084
  %v2086 = vpop.xlane.xlu0 %2085
  %v2087 = vsel %vm195, %v2075, -inf
  %2088 = vmax.xlane.f32.xlu0 %v2087
  %v2089 = vpop.xlane.xlu0 %2088
  %v2090 = vsel %vm195, %v2076, -inf
  %2091 = vmax.xlane.f32.xlu0 %v2090
  %v2092 = vpop.xlane.xlu0 %2091
  %v2093 = vsel %vm195, %v2077, -inf
  %2094 = vmax.xlane.f32.xlu0 %v2093
  %v2095 = vpop.xlane.xlu0 %2094
  %v2096 = vsel %vm195, %v2078, -inf
  %2097 = vmax.xlane.f32.xlu0 %v2096
  %v2098 = vpop.xlane.xlu0 %2097
  %v2099 = vsel %vm195, %v2079, -inf
  %2100 = vmax.xlane.f32.xlu0 %v2099
  %v2101 = vpop.xlane.xlu0 %2100
  %v2102 = vsel %vm195, %v2080, -inf
  %2103 = vmax.xlane.f32.xlu0 %v2102
  %v2104 = vpop.xlane.xlu0 %2103
  %v2105 = vsub.f32 %v2073, %v2083
  %v2106 = vsub.f32 %v2074, %v2086
  %v2107 = vsub.f32 %v2075, %v2089
  %v2108 = vsub.f32 %v2076, %v2092
  %v2109 = vsub.f32 %v2077, %v2095
  %v2110 = vsub.f32 %v2078, %v2098
  %v2111 = vsub.f32 %v2079, %v2101
  %v2112 = vsub.f32 %v2080, %v2104
  %v2113 = vmul.f32 %v2105, 1.442695
  %v2114 = vpow.pop %v2113
  %v2115 = vmul.f32 %v2106, 1.442695
  %v2116 = vpow.pop %v2115
  %v2117 = vmul.f32 %v2107, 1.442695
  %v2118 = vpow.pop %v2117
  %v2119 = vmul.f32 %v2108, 1.442695
  %v2120 = vpow.pop %v2119
  %v2121 = vmul.f32 %v2109, 1.442695
  %v2122 = vpow.pop %v2121
  %v2123 = vmul.f32 %v2110, 1.442695
  %v2124 = vpow.pop %v2123
  %v2125 = vmul.f32 %v2111, 1.442695
  %v2126 = vpow.pop %v2125
  %v2127 = vmul.f32 %v2112, 1.442695
  %v2128 = vpow.pop %v2127
  %v2129 = vsel %vm195, %v2114, 0.0
  %2130 = vadd.xlane.f32.xlu0 %v2129
  %v2131 = vpop.xlane.xlu0 %2130
  %v2132 = vsel %vm195, %v2116, 0.0
  %2133 = vadd.xlane.f32.xlu0 %v2132
  %v2134 = vpop.xlane.xlu0 %2133
  %v2135 = vsel %vm195, %v2118, 0.0
  %2136 = vadd.xlane.f32.xlu0 %v2135
  %v2137 = vpop.xlane.xlu0 %2136
  %v2138 = vsel %vm195, %v2120, 0.0
  %2139 = vadd.xlane.f32.xlu0 %v2138
  %v2140 = vpop.xlane.xlu0 %2139
  %v2141 = vsel %vm195, %v2122, 0.0
  %2142 = vadd.xlane.f32.xlu0 %v2141
  %v2143 = vpop.xlane.xlu0 %2142
  %v2144 = vsel %vm195, %v2124, 0.0
  %2145 = vadd.xlane.f32.xlu0 %v2144
  %v2146 = vpop.xlane.xlu0 %2145
  %v2147 = vsel %vm195, %v2126, 0.0
  %2148 = vadd.xlane.f32.xlu0 %v2147
  %v2149 = vpop.xlane.xlu0 %2148
  %v2150 = vsel %vm195, %v2128, 0.0
  %2151 = vadd.xlane.f32.xlu0 %v2150
  %v2152 = vpop.xlane.xlu0 %2151
  %v2153 = vrcp.pop %v2131
  %v2154 = vrcp.pop %v2134
  %v2155 = vrcp.pop %v2137
  %v2156 = vrcp.pop %v2140
  %v2157 = vrcp.pop %v2143
  %v2158 = vrcp.pop %v2146
  %v2159 = vrcp.pop %v2149
  %v2160 = vrcp.pop %v2152
  %v2161 = vmul.f32 %v2114, %v2153
  %v2162 = vmul.f32 %v2116, %v2154
  %v2163 = vmul.f32 %v2118, %v2155
  %v2164 = vmul.f32 %v2120, %v2156
  %v2165 = vmul.f32 %v2122, %v2157
  %v2166 = vmul.f32 %v2124, %v2158
  %v2167 = vmul.f32 %v2126, %v2159
  %v2168 = vmul.f32 %v2128, %v2160
  %v2170 = vsel %vm195, %v2161, 0
  %2172 = vmatpush.msra.mxu0 0.0
  %2173 = vmatpush.msra.mxu0 0.0
  %2174 = vmatpush.msra.mxu0 0.0
  %2175 = vmatpush.msra.mxu0 0.0
  %2176 = vmatpush.msra.mxu0 0.0
  %2177 = vmatpush.msra.mxu0 0.0
  %2178 = vmatpush.msra.mxu0 0.0
  %2179 = vmatpush.msra.mxu0 0.0
  %2180 = vmatpush.msra.mxu0 0.0
  %2181 = vmatpush.msra.mxu0 0.0
  %2182 = vmatpush.msra.mxu0 0.0
  %2183 = vmatpush.msra.mxu0 0.0
  %2184 = vmatpush.msra.mxu0 0.0
  %2185 = vmatpush.msra.mxu0 0.0
  %2186 = vmatpush.msra.mxu0 0.0
  %2187 = vmatpush.msra.mxu0 %v1686
  %2188 = vmatmul.f32.gmra.mxu0 %v2170
  %v2189 = vpop.f32.mrf.mxu0
  %v2190 = vadd.f32 0.0, %v2189
  %2191 = vdwg.mxu0
  %v2193 = vsel %vm195, %v2162, 0
  %2195 = vmatpush.msra.mxu0 0.0
  %2196 = vmatpush.msra.mxu0 0.0
  %2197 = vmatpush.msra.mxu0 0.0
  %2198 = vmatpush.msra.mxu0 0.0
  %2199 = vmatpush.msra.mxu0 0.0
  %2200 = vmatpush.msra.mxu0 0.0
  %2201 = vmatpush.msra.mxu0 0.0
  %2202 = vmatpush.msra.mxu0 0.0
  %2203 = vmatpush.msra.mxu0 0.0
  %2204 = vmatpush.msra.mxu0 0.0
  %2205 = vmatpush.msra.mxu0 0.0
  %2206 = vmatpush.msra.mxu0 0.0
  %2207 = vmatpush.msra.mxu0 0.0
  %2208 = vmatpush.msra.mxu0 0.0
  %2209 = vmatpush.msra.mxu0 0.0
  %2210 = vmatpush.msra.mxu0 %v1690
  %2211 = vmatmul.f32.gmra.mxu0 %v2193
  %v2212 = vpop.f32.mrf.mxu0
  %v2213 = vadd.f32 0.0, %v2212
  %2214 = vdwg.mxu0
  %v2216 = vsel %vm195, %v2163, 0
  %2218 = vmatpush.msra.mxu0 0.0
  %2219 = vmatpush.msra.mxu0 0.0
  %2220 = vmatpush.msra.mxu0 0.0
  %2221 = vmatpush.msra.mxu0 0.0
  %2222 = vmatpush.msra.mxu0 0.0
  %2223 = vmatpush.msra.mxu0 0.0
  %2224 = vmatpush.msra.mxu0 0.0
  %2225 = vmatpush.msra.mxu0 0.0
  %2226 = vmatpush.msra.mxu0 0.0
  %2227 = vmatpush.msra.mxu0 0.0
  %2228 = vmatpush.msra.mxu0 0.0
  %2229 = vmatpush.msra.mxu0 0.0
  %2230 = vmatpush.msra.mxu0 0.0
  %2231 = vmatpush.msra.mxu0 0.0
  %2232 = vmatpush.msra.mxu0 0.0
  %2233 = vmatpush.msra.mxu0 %v1693
  %2234 = vmatmul.f32.gmra.mxu0 %v2216
  %v2235 = vpop.f32.mrf.mxu0
  %v2236 = vadd.f32 0.0, %v2235
  %2237 = vdwg.mxu0
  %v2239 = vsel %vm195, %v2164, 0
  %2241 = vmatpush.msra.mxu0 0.0
  %2242 = vmatpush.msra.mxu0 0.0
  %2243 = vmatpush.msra.mxu0 0.0
  %2244 = vmatpush.msra.mxu0 0.0
  %2245 = vmatpush.msra.mxu0 0.0
  %2246 = vmatpush.msra.mxu0 0.0
  %2247 = vmatpush.msra.mxu0 0.0
  %2248 = vmatpush.msra.mxu0 0.0
  %2249 = vmatpush.msra.mxu0 0.0
  %2250 = vmatpush.msra.mxu0 0.0
  %2251 = vmatpush.msra.mxu0 0.0
  %2252 = vmatpush.msra.mxu0 0.0
  %2253 = vmatpush.msra.mxu0 0.0
  %2254 = vmatpush.msra.mxu0 0.0
  %2255 = vmatpush.msra.mxu0 0.0
  %2256 = vmatpush.msra.mxu0 %v1696
  %2257 = vmatmul.f32.gmra.mxu0 %v2239
  %v2258 = vpop.f32.mrf.mxu0
  %v2259 = vadd.f32 0.0, %v2258
  %2260 = vdwg.mxu0
  %v2262 = vsel %vm195, %v2165, 0
  %2264 = vmatpush.msra.mxu0 0.0
  %2265 = vmatpush.msra.mxu0 0.0
  %2266 = vmatpush.msra.mxu0 0.0
  %2267 = vmatpush.msra.mxu0 0.0
  %2268 = vmatpush.msra.mxu0 0.0
  %2269 = vmatpush.msra.mxu0 0.0
  %2270 = vmatpush.msra.mxu0 0.0
  %2271 = vmatpush.msra.mxu0 0.0
  %2272 = vmatpush.msra.mxu0 0.0
  %2273 = vmatpush.msra.mxu0 0.0
  %2274 = vmatpush.msra.mxu0 0.0
  %2275 = vmatpush.msra.mxu0 0.0
  %2276 = vmatpush.msra.mxu0 0.0
  %2277 = vmatpush.msra.mxu0 0.0
  %2278 = vmatpush.msra.mxu0 0.0
  %2279 = vmatpush.msra.mxu0 %v1699
  %2280 = vmatmul.f32.gmra.mxu0 %v2262
  %v2281 = vpop.f32.mrf.mxu0
  %v2282 = vadd.f32 0.0, %v2281
  %2283 = vdwg.mxu0
  %v2285 = vsel %vm195, %v2166, 0
  %2287 = vmatpush.msra.mxu0 0.0
  %2288 = vmatpush.msra.mxu0 0.0
  %2289 = vmatpush.msra.mxu0 0.0
  %2290 = vmatpush.msra.mxu0 0.0
  %2291 = vmatpush.msra.mxu0 0.0
  %2292 = vmatpush.msra.mxu0 0.0
  %2293 = vmatpush.msra.mxu0 0.0
  %2294 = vmatpush.msra.mxu0 0.0
  %2295 = vmatpush.msra.mxu0 0.0
  %2296 = vmatpush.msra.mxu0 0.0
  %2297 = vmatpush.msra.mxu0 0.0
  %2298 = vmatpush.msra.mxu0 0.0
  %2299 = vmatpush.msra.mxu0 0.0
  %2300 = vmatpush.msra.mxu0 0.0
  %2301 = vmatpush.msra.mxu0 0.0
  %2302 = vmatpush.msra.mxu0 %v1702
  %2303 = vmatmul.f32.gmra.mxu0 %v2285
  %v2304 = vpop.f32.mrf.mxu0
  %v2305 = vadd.f32 0.0, %v2304
  %2306 = vdwg.mxu0
  %v2308 = vsel %vm195, %v2167, 0
  %2310 = vmatpush.msra.mxu0 0.0
  %2311 = vmatpush.msra.mxu0 0.0
  %2312 = vmatpush.msra.mxu0 0.0
  %2313 = vmatpush.msra.mxu0 0.0
  %2314 = vmatpush.msra.mxu0 0.0
  %2315 = vmatpush.msra.mxu0 0.0
  %2316 = vmatpush.msra.mxu0 0.0
  %2317 = vmatpush.msra.mxu0 0.0
  %2318 = vmatpush.msra.mxu0 0.0
  %2319 = vmatpush.msra.mxu0 0.0
  %2320 = vmatpush.msra.mxu0 0.0
  %2321 = vmatpush.msra.mxu0 0.0
  %2322 = vmatpush.msra.mxu0 0.0
  %2323 = vmatpush.msra.mxu0 0.0
  %2324 = vmatpush.msra.mxu0 0.0
  %2325 = vmatpush.msra.mxu0 %v1705
  %2326 = vmatmul.f32.gmra.mxu0 %v2308
  %v2327 = vpop.f32.mrf.mxu0
  %v2328 = vadd.f32 0.0, %v2327
  %2329 = vdwg.mxu0
  %v2331 = vsel %vm195, %v2168, 0
  %2333 = vmatpush.msra.mxu0 0.0
  %2334 = vmatpush.msra.mxu0 0.0
  %2335 = vmatpush.msra.mxu0 0.0
  %2336 = vmatpush.msra.mxu0 0.0
  %2337 = vmatpush.msra.mxu0 0.0
  %2338 = vmatpush.msra.mxu0 0.0
  %2339 = vmatpush.msra.mxu0 0.0
  %2340 = vmatpush.msra.mxu0 0.0
  %2341 = vmatpush.msra.mxu0 0.0
  %2342 = vmatpush.msra.mxu0 0.0
  %2343 = vmatpush.msra.mxu0 0.0
  %2344 = vmatpush.msra.mxu0 0.0
  %2345 = vmatpush.msra.mxu0 0.0
  %2346 = vmatpush.msra.mxu0 0.0
  %2347 = vmatpush.msra.mxu0 0.0
  %2348 = vmatpush.msra.mxu0 %v1708
  %2349 = vmatmul.f32.gmra.mxu0 %v2331
  %v2350 = vpop.f32.mrf.mxu0
  %v2351 = vadd.f32 0.0, %v2350
  %2352 = vdwg.mxu0
  %2354 = vrot.lane.b32.xlu0 %v2213, 8
  %v2355 = vpop.permute.xlu0 %2354
  %2358 = vrot.lane.b32.xlu0 %v2236, 16
  %v2359 = vpop.permute.xlu0 %2358
  %2362 = vrot.lane.b32.xlu0 %v2259, 24
  %v2363 = vpop.permute.xlu0 %2362
  %2366 = vrot.lane.b32.xlu0 %v2282, 32
  %v2367 = vpop.permute.xlu0 %2366
  %2370 = vrot.lane.b32.xlu0 %v2305, 40
  %v2371 = vpop.permute.xlu0 %2370
  %2374 = vrot.lane.b32.xlu0 %v2328, 48
  %v2375 = vpop.permute.xlu0 %2374
  %2378 = vrot.lane.b32.xlu0 %v2351, 56
  %v2379 = vpop.permute.xlu0 %2378
  %v2381 = vsel %vm195, %v2190, %v2355
  %v2382 = vsel %vm849, %v2381, %v2359
  %v2383 = vsel %vm851, %v2382, %v2363
  %v2384 = vsel %vm853, %v2383, %v2367
  %v2385 = vsel %vm855, %v2384, %v2371
  %v2386 = vsel %vm857, %v2385, %v2375
  %v2387 = vsel %vm859, %v2386, %v2379
  %v2389 = vperm.slane %v1638, 0
  %v2391 = vadd.f32 %v2387, %v2389
  %v2392 = vmax.f32 %v2391, 0.0
  %v2393 = vld [vmem:[%s21] sm:$0xff]
  %v2395 = vsel %vm195, %v2393, 0
  %2397 = vmatpush.msra.mxu0 0.0
  %2398 = vmatpush.msra.mxu0 0.0
  %2399 = vmatpush.msra.mxu0 0.0
  %2400 = vmatpush.msra.mxu0 0.0
  %2401 = vmatpush.msra.mxu0 0.0
  %2402 = vmatpush.msra.mxu0 0.0
  %2403 = vmatpush.msra.mxu0 0.0
  %2404 = vmatpush.msra.mxu0 0.0
  %2405 = vmatpush.msra.mxu0 0.0
  %2406 = vmatpush.msra.mxu0 0.0
  %2407 = vmatpush.msra.mxu0 0.0
  %2408 = vmatpush.msra.mxu0 0.0
  %2409 = vmatpush.msra.mxu0 0.0
  %2410 = vmatpush.msra.mxu0 0.0
  %2411 = vmatpush.msra.mxu0 0.0
  %2412 = vmatpush.msra.mxu0 %v2392
  %2413 = vmatmul.f32.gmra.mxu0 %v2395
  %v2414 = vpop.f32.mrf.mxu0
  %v2415 = vadd.f32 0.0, %v2414
  %2416 = vdwg.mxu0
  %v2417 = vld [vmem:[%s22] sm:$0xff]
  %v2418 = vld [vmem:[%s22 + $0x8] sm:$0xff]
  %v2419 = vld [vmem:[%s22 + $0x10] sm:$0xff]
  %v2420 = vld [vmem:[%s22 + $0x18] sm:$0xff]
  %v2421 = vld [vmem:[%s22 + $0x20] sm:$0xff]
  %v2422 = vld [vmem:[%s22 + $0x28] sm:$0xff]
  %v2423 = vld [vmem:[%s22 + $0x30] sm:$0xff]
  %v2424 = vld [vmem:[%s22 + $0x38] sm:$0xff]
  %v2425 = vld [vmem:[%s23] sm:$0x1]
  %v2427 = vperm.slane %v2425, 0
  %v2430 = vsel %vm901, %v2415, 0
  %2432 = vmatpush.msra.mxu0 0.0
  %2433 = vmatpush.msra.mxu0 0.0
  %2434 = vmatpush.msra.mxu0 0.0
  %2435 = vmatpush.msra.mxu0 0.0
  %2436 = vmatpush.msra.mxu0 0.0
  %2437 = vmatpush.msra.mxu0 0.0
  %2438 = vmatpush.msra.mxu0 0.0
  %2439 = vmatpush.msra.mxu0 0.0
  %2440 = vmatpush.msra.mxu0 %v2424
  %2441 = vmatpush.msra.mxu0 %v2423
  %2442 = vmatpush.msra.mxu0 %v2422
  %2443 = vmatpush.msra.mxu0 %v2421
  %2444 = vmatpush.msra.mxu0 %v2420
  %2445 = vmatpush.msra.mxu0 %v2419
  %2446 = vmatpush.msra.mxu0 %v2418
  %2447 = vmatpush.msra.mxu0 %v2417
  %2448 = vmatmul.f32.gmra.mxu0 %v2430
  %v2449 = vpop.f32.mrf.mxu0
  %v2450 = vadd.f32 %v2427, %v2449
  %2451 = vdwg.mxu0
  %v2452 = vmax.f32 %v2450, 0.0
  %v2453 = vld [vmem:[%s24] sm:$0xff]
  %v2454 = vld [vmem:[%s24 + $0x8] sm:$0xff]
  %v2455 = vld [vmem:[%s24 + $0x10] sm:$0xff]
  %v2456 = vld [vmem:[%s24 + $0x18] sm:$0xff]
  %v2457 = vld [vmem:[%s25] sm:$0x1]
  %v2459 = vperm.slane %v2457, 0
  %v2462 = vsel %vm853, %v2452, 0
  %2464 = vmatpush.msra.mxu0 0.0
  %2465 = vmatpush.msra.mxu0 0.0
  %2466 = vmatpush.msra.mxu0 0.0
  %2467 = vmatpush.msra.mxu0 0.0
  %2468 = vmatpush.msra.mxu0 0.0
  %2469 = vmatpush.msra.mxu0 0.0
  %2470 = vmatpush.msra.mxu0 0.0
  %2471 = vmatpush.msra.mxu0 0.0
  %2472 = vmatpush.msra.mxu0 0.0
  %2473 = vmatpush.msra.mxu0 0.0
  %2474 = vmatpush.msra.mxu0 0.0
  %2475 = vmatpush.msra.mxu0 0.0
  %2476 = vmatpush.msra.mxu0 %v2456
  %2477 = vmatpush.msra.mxu0 %v2455
  %2478 = vmatpush.msra.mxu0 %v2454
  %2479 = vmatpush.msra.mxu0 %v2453
  %2480 = vmatmul.f32.gmra.mxu0 %v2462
  %v2481 = vpop.f32.mrf.mxu0
  %v2482 = vadd.f32 %v2459, %v2481
  %2483 = vdwg.mxu0
  %2484 = vst [vmem:[%s26] sm:$0xff] %v2482
  // Predicated region
  $region106: #{expert_gate_net.1} parent=0 // pred_check
    _
  $region107: #{expert_gate_net.1} parent=0 // pred_check_branch
    %2486 = sbr.rel (0) target = $region109
  $region108: #{expert_gate_net.1} parent=0 // pred_region
    _
  $region109: #{expert_gate_net.1} parent=0 // pred_fallthru
    _
  // Predicated region
  $region110: #{expert_gate_net.1} parent=0 // pred_check
    _
  $region111: #{expert_gate_net.1} parent=0 // pred_check_branch
    %2488 = sbr.rel (0) target = $region113
  $region112: #{expert_gate_net.1} parent=0 // pred_region
    _
  $region113: #{expert_gate_net.1} parent=0 // pred_fallthru
    _

</llo_original>
